<compile_context>
chip_gen: v5e
topology: v5e:2x2
jax: 0.10.0
libtpu: 0.0.40
codegen_flags: <defaults>
</compile_context>

<pallas_src>
import jax
import jax.numpy as jnp
from jax.experimental import pallas as pl
from jax.experimental.pallas import tpu as pltpu


def bertfc_head_kernel(x_ref, w1_ref, b1_ref, w2_ref, b2_ref, w3_ref, b3_ref, o_ref):
    """Fused fc1 -> fc2 -> fc3 head for one batch tile.

    x_ref:  (TM, E)   bf16 activation tile
    wN_ref: (in, out) bf16 weights (full blocks, resident for every grid step)
    bN_ref: (1, out)  f32 biases
    o_ref:  (TM, Cp)  f32 output tile (lane-padded class dim)
    """
    # dropout == identity in eval mode, so the three layers chain directly.
    # bf16 x bf16 -> f32 accumulation on the MXU; re-cast hidden activations to bf16
    # so every matmul stays on the fast bf16 MXU path.
    h1 = jnp.dot(x_ref[...], w1_ref[...], preferred_element_type=jnp.float32) + b1_ref[...]
    h2 = jnp.dot(h1.astype(jnp.bfloat16), w2_ref[...],
                 preferred_element_type=jnp.float32) + b2_ref[...]
    h3 = jnp.dot(h2.astype(jnp.bfloat16), w3_ref[...],
                 preferred_element_type=jnp.float32) + b3_ref[...]
    o_ref[...] = h3.astype(o_ref.dtype)


def bertfc_head(x, w1, b1, w2, b2, w3, b3, *, tm=128):
    """x: [B, E] float32 'logits' from BERT.  Returns [B, class_num] float32.

    Weights wN are [in_features, out_features] (so the kernel computes x @ W + b,
    equivalent to PyTorch's x @ W.T + b with W stored [out, in]).
    """
    B, E = x.shape
    H1 = w1.shape[1]
    H2 = w2.shape[1]
    C = w3.shape[1]

    # Lane-pad the class dimension to a multiple of 128 (avoids masked partial stores).
    Cp = ((C + 127) // 128) * 128
    w3p = jnp.pad(w3, ((0, 0), (0, Cp - C)))
    b3p = jnp.pad(b3, ((0, 0), (0, Cp - C)))

    # Pad batch to a multiple of the batch tile.
    Bp = ((B + tm - 1) // tm) * tm
    xp = jnp.pad(x, ((0, Bp - B), (0, 0))).astype(jnp.bfloat16)

    # Stream weights as bf16 (halves HBM traffic, which dominates this kernel).
    w1b = w1.astype(jnp.bfloat16)
    w2b = w2.astype(jnp.bfloat16)
    w3b = w3p.astype(jnp.bfloat16)
    b1f = b1.astype(jnp.float32)
    b2f = b2.astype(jnp.float32)
    b3f = b3p.astype(jnp.float32)

    grid = (Bp // tm,)

    out = pl.pallas_call(
        bertfc_head_kernel,
        out_shape=jax.ShapeDtypeStruct((Bp, Cp), jnp.float32),
        grid=grid,
        in_specs=[
            pl.BlockSpec((tm, E), lambda i: (i, 0)),   # activations: tiled over batch
            pl.BlockSpec((E, H1), lambda i: (0, 0)),   # weights/biases: full blocks
            pl.BlockSpec((1, H1), lambda i: (0, 0)),
            pl.BlockSpec((H1, H2), lambda i: (0, 0)),
            pl.BlockSpec((1, H2), lambda i: (0, 0)),
            pl.BlockSpec((H2, Cp), lambda i: (0, 0)),
            pl.BlockSpec((1, Cp), lambda i: (0, 0)),
        ],
        out_specs=pl.BlockSpec((tm, Cp), lambda i: (i, 0)),
        compiler_params=pltpu.CompilerParams(
            dimension_semantics=("parallel",),  # batch axis -> megacore on v7x + pipelining
        ),
    )(xp, w1b, b1f, w2b, b2f, w3b, b3f)

    return out[:B, :C]


def _linear_init(key, fan_in, fan_out):
    """Deterministic init mimicking torch.nn.Linear (uniform +- 1/sqrt(fan_in))."""
    kw, kb = jax.random.split(key)
    bound = 1.0 / jnp.sqrt(float(fan_in))
    w = jax.random.uniform(kw, (fan_in, fan_out), jnp.float32, -bound, bound)
    b = jax.random.uniform(kb, (1, fan_out), jnp.float32, -bound, bound)
    return w, b


if __name__ == "__main__":
    # Shapes implied by the module:
    #   embed_dim = 768 (BertForSequenceClassification num_labels=768),
    #   fc1: 768 -> 384, fc2: 384 -> 192, fc3: 192 -> class_num.
    batch = 256          # 2 batch tiles of 128 -> exercises the parallel grid axis
    embed_dim = 768
    class_num = 8

    key = jax.random.PRNGKey(0)
    k_x, k1, k2, k3 = jax.random.split(key, 4)

    # Stand-in for the BERT "logits" output (see TODO above): [batch, embed_dim].
    x = jax.random.normal(k_x, (batch, embed_dim), jnp.float32)

    w1, b1 = _linear_init(k1, embed_dim, embed_dim // 2)
    w2, b2 = _linear_init(k2, embed_dim // 2, embed_dim // 4)
    w3, b3 = _linear_init(k3, embed_dim // 4, class_num)

    out = bertfc_head(x, w1, b1, w2, b2, w3, b3)
    out = jax.block_until_ready(out)
    assert out.shape == (batch, class_num)

    # 1) bf16-matched reference (same rounding as the kernel) -> tight check.
    xb = x.astype(jnp.bfloat16)
    w1b, w2b, w3b = (w.astype(jnp.bfloat16) for w in (w1, w2, w3))
    h1 = jnp.dot(xb, w1b, preferred_element_type=jnp.float32) + b1
    h2 = jnp.dot(h1.astype(jnp.bfloat16), w2b, preferred_element_type=jnp.float32) + b2
    ref_bf16 = jnp.dot(h2.astype(jnp.bfloat16), w3b, preferred_element_type=jnp.float32) + b3
    assert jnp.allclose(out, ref_bf16, atol=1e-3, rtol=1e-3)

    # 2) full-f32 reference (module semantics) -> loose check (bf16 weight rounding).
    ref_f32 = ((x @ w1 + b1) @ w2 + b2) @ w3 + b3
    assert jnp.allclose(out, ref_f32, atol=5e-2, rtol=5e-2)

    print("KERNEL_OK")
</pallas_src>

<mosaic_0001>
module attributes {stable_mosaic.version = 11 : i64} {
  func.func @bertfc_head_kernel(%arg0: i32, %arg1: memref<128x768xbf16, #tpu.memory_space<vmem>>, %arg2: memref<768x384xbf16, #tpu.memory_space<vmem>>, %arg3: memref<1x384xf32, #tpu.memory_space<vmem>>, %arg4: memref<384x192xbf16, #tpu.memory_space<vmem>>, %arg5: memref<1x192xf32, #tpu.memory_space<vmem>>, %arg6: memref<192x128xbf16, #tpu.memory_space<vmem>>, %arg7: memref<1x128xf32, #tpu.memory_space<vmem>>, %arg8: memref<128x128xf32, #tpu.memory_space<vmem>>) attributes {dimension_semantics = [#tpu.dimension_semantics<parallel>], iteration_bounds = array<i64: 2>, scalar_prefetch = 0 : i64, scratch_operands = 0 : i64, tpu.core_type = #tpu.core_type<tc>, window_params = [{transform_indices = @transform_0, window_bounds = array<i64: 128, 768>}, {pipeline_mode = #tpu.pipeline_mode<synchronous>, transform_indices = @transform_1, window_bounds = array<i64: 768, 384>}, {pipeline_mode = #tpu.pipeline_mode<synchronous>, transform_indices = @transform_2, window_bounds = array<i64: 1, 384>}, {pipeline_mode = #tpu.pipeline_mode<synchronous>, transform_indices = @transform_3, window_bounds = array<i64: 384, 192>}, {pipeline_mode = #tpu.pipeline_mode<synchronous>, transform_indices = @transform_4, window_bounds = array<i64: 1, 192>}, {pipeline_mode = #tpu.pipeline_mode<synchronous>, transform_indices = @transform_5, window_bounds = array<i64: 192, 128>}, {pipeline_mode = #tpu.pipeline_mode<synchronous>, transform_indices = @transform_6, window_bounds = array<i64: 1, 128>}, {transform_indices = @transform_7, window_bounds = array<i64: 128, 128>}]} {
    %c0 = arith.constant 0 : index
    %c0_0 = arith.constant 0 : index
    %0 = vector.load %arg1[%c0, %c0_0] : memref<128x768xbf16, #tpu.memory_space<vmem>>, vector<128x768xbf16>
    %c0_1 = arith.constant 0 : index
    %c0_2 = arith.constant 0 : index
    %1 = vector.load %arg2[%c0_1, %c0_2] : memref<768x384xbf16, #tpu.memory_space<vmem>>, vector<768x384xbf16>
    %cst = arith.constant dense<0.000000e+00> : vector<128x384xf32>
    %2 = tpu.matmul %0, %1, %cst {dimension_numbers = #tpu.dot_dimension_numbers<[1], [0], [0], [1], [0, 0, 1, 1], [], []>} : vector<128x768xbf16>, vector<768x384xbf16>, vector<128x384xf32> -> vector<128x384xf32>
    %c0_3 = arith.constant 0 : index
    %c0_4 = arith.constant 0 : index
    %3 = vector.load %arg3[%c0_3, %c0_4] : memref<1x384xf32, #tpu.memory_space<vmem>>, vector<1x384xf32>
    %4 = vector.broadcast %3 : vector<1x384xf32> to vector<128x384xf32>
    %5 = arith.addf %2, %4 : vector<128x384xf32>
    %6 = arith.truncf %5 : vector<128x384xf32> to vector<128x384xbf16>
    %c0_5 = arith.constant 0 : index
    %c0_6 = arith.constant 0 : index
    %7 = vector.load %arg4[%c0_5, %c0_6] : memref<384x192xbf16, #tpu.memory_space<vmem>>, vector<384x192xbf16>
    %cst_7 = arith.constant dense<0.000000e+00> : vector<128x192xf32>
    %8 = tpu.matmul %6, %7, %cst_7 {dimension_numbers = #tpu.dot_dimension_numbers<[1], [0], [0], [1], [0, 0, 1, 1], [], []>} : vector<128x384xbf16>, vector<384x192xbf16>, vector<128x192xf32> -> vector<128x192xf32>
    %c0_8 = arith.constant 0 : index
    %c0_9 = arith.constant 0 : index
    %9 = vector.load %arg5[%c0_8, %c0_9] : memref<1x192xf32, #tpu.memory_space<vmem>>, vector<1x192xf32>
    %10 = vector.broadcast %9 : vector<1x192xf32> to vector<128x192xf32>
    %11 = arith.addf %8, %10 : vector<128x192xf32>
    %12 = arith.truncf %11 : vector<128x192xf32> to vector<128x192xbf16>
    %c0_10 = arith.constant 0 : index
    %c0_11 = arith.constant 0 : index
    %13 = vector.load %arg6[%c0_10, %c0_11] : memref<192x128xbf16, #tpu.memory_space<vmem>>, vector<192x128xbf16>
    %cst_12 = arith.constant dense<0.000000e+00> : vector<128x128xf32>
    %14 = tpu.matmul %12, %13, %cst_12 {dimension_numbers = #tpu.dot_dimension_numbers<[1], [0], [0], [1], [0, 0, 1, 1], [], []>} : vector<128x192xbf16>, vector<192x128xbf16>, vector<128x128xf32> -> vector<128x128xf32>
    %c0_13 = arith.constant 0 : index
    %c0_14 = arith.constant 0 : index
    %15 = vector.load %arg7[%c0_13, %c0_14] : memref<1x128xf32, #tpu.memory_space<vmem>>, vector<1x128xf32>
    %16 = vector.broadcast %15 : vector<1x128xf32> to vector<128x128xf32>
    %17 = arith.addf %14, %16 : vector<128x128xf32>
    %c0_15 = arith.constant 0 : index
    %c0_16 = arith.constant 0 : index
    %18 = vector.load %arg8[%c0_15, %c0_16] : memref<128x128xf32, #tpu.memory_space<vmem>>, vector<128x128xf32>
    tpu.vector_store %arg8[%c0_15, %c0_16], %17 {strides = array<i32>} : memref<128x128xf32, #tpu.memory_space<vmem>>, vector<128x128xf32>,
    return
  }
  func.func @transform_0(%arg0: i32) -> (i32, i32) {
    %c0_i32 = arith.constant 0 : i32
    %c0_i32_0 = arith.constant 0 : i32
    return %arg0, %c0_i32 : i32, i32
  }
  func.func @transform_1(%arg0: i32) -> (i32, i32) {
    %c0_i32 = arith.constant 0 : i32
    %c0_i32_0 = arith.constant 0 : i32
    %c0_i32_1 = arith.constant 0 : i32
    return %c0_i32, %c0_i32_0 : i32, i32
  }
  func.func @transform_2(%arg0: i32) -> (i32, i32) {
    %c0_i32 = arith.constant 0 : i32
    %c0_i32_0 = arith.constant 0 : i32
    %c0_i32_1 = arith.constant 0 : i32
    return %c0_i32, %c0_i32_0 : i32, i32
  }
  func.func @transform_3(%arg0: i32) -> (i32, i32) {
    %c0_i32 = arith.constant 0 : i32
    %c0_i32_0 = arith.constant 0 : i32
    %c0_i32_1 = arith.constant 0 : i32
    return %c0_i32, %c0_i32_0 : i32, i32
  }
  func.func @transform_4(%arg0: i32) -> (i32, i32) {
    %c0_i32 = arith.constant 0 : i32
    %c0_i32_0 = arith.constant 0 : i32
    %c0_i32_1 = arith.constant 0 : i32
    return %c0_i32, %c0_i32_0 : i32, i32
  }
  func.func @transform_5(%arg0: i32) -> (i32, i32) {
    %c0_i32 = arith.constant 0 : i32
    %c0_i32_0 = arith.constant 0 : i32
    %c0_i32_1 = arith.constant 0 : i32
    return %c0_i32, %c0_i32_0 : i32, i32
  }
  func.func @transform_6(%arg0: i32) -> (i32, i32) {
    %c0_i32 = arith.constant 0 : i32
    %c0_i32_0 = arith.constant 0 : i32
    %c0_i32_1 = arith.constant 0 : i32
    return %c0_i32, %c0_i32_0 : i32, i32
  }
  func.func @transform_7(%arg0: i32) -> (i32, i32) {
    %c0_i32 = arith.constant 0 : i32
    %c0_i32_0 = arith.constant 0 : i32
    return %arg0, %c0_i32 : i32, i32
  }
}

</mosaic_0001>

<llo_original>
// kernel: tpu_custom_call.1
$region0: #{tpu_custom_call.1}
  #allocation0 [shape = 'u32[]', space=smem, size = 0x4, offset = 0x4, fixed_abs, tag = 'smem constant byte address 0x4 - core index']
  #allocation1 [shape = 'u32[72,128]{1,0:T(1,128)}', space=vmem, size = 0x9000, scoped, tag = 'internal scratch']
  %s0 = inlined_call_operand.hbm [shape: bf16[256,768], index: 0, kind: input, shape index: {}]
  %s1 = inlined_call_operand.hbm [shape: bf16[768,384], index: 1, kind: input, shape index: {}]
  %s2 = inlined_call_operand.vmem [shape: f32[1,384], index: 2, kind: input, shape index: {}]
  %s3 = inlined_call_operand.vmem [shape: bf16[384,192], index: 3, kind: input, shape index: {}]
  %s4 = inlined_call_operand.vmem [shape: f32[1,192], index: 4, kind: input, shape index: {}]
  %s5 = inlined_call_operand.vmem [shape: bf16[192,128], index: 5, kind: input, shape index: {}]
  %s6 = inlined_call_operand.vmem [shape: f32[1,128], index: 6, kind: input, shape index: {}]
  %s7 = inlined_call_operand.hbm [shape: f32[256,128], index: 7, kind: output, shape index: {}]
  %s8 = sld [smem:[#allocation0]]
  $region69: #{tpu_custom_call.1} parent=0
    _
  %s10 = ssub.s32 1, %s8
  %s11 = scalar_select 0, %s10, %s8
  $region1: #{tpu_custom_call.1} parent=0
    #allocation2 [shape = 'u8[393216]{0}', space=vmem, size = 0x60000, scoped, tag = 'input window, operand 0']
    #allocation3 [shape = 's32[2]{0}', space=sflag, size = 0x8, scoped, tag = 'scoped memory for tpu_custom_call.1']
    #allocation4 [shape = 's32[2]{0}', space=sflag, size = 0x8, scoped, tag = 'scoped memory for tpu_custom_call.1']
    #allocation5 [shape = 'u8[589824]{0}', space=vmem, size = 0x90000, scoped, tag = 'input window, operand 1, single buffered']
    #allocation6 [shape = 's32[1]{0}', space=sflag, size = 0x4, scoped, tag = 'scoped memory for tpu_custom_call.1']
    #allocation7 [shape = 'u8[131072]{0}', space=vmem, size = 0x20000, scoped, tag = 'output window, operand 0']
    %12 = vsyncpa [#allocation3], 0
    %s13 = scalar_lea.sflag [#allocation3], 1
    %14 = vsyncpa %s13, 0
    %15 = vsyncpa [#allocation6], 0
    %16 = vsyncpa [#allocation4], 0
    %s17 = scalar_lea.sflag [#allocation4], 1
    %18 = vsyncpa %s17, 0
    loop: start=0, step=1, limit=4
    $region2: #{tpu_custom_call.1} parent=1 // loop_pre_header
      _
    $region3: #{tpu_custom_call.1} parent=1 // loop_header
      %s20 = sphi 0, %s24
      %p21 = scmp.ge.s32.totalorder %s20, 4
      %s30 = sphi 0, %s32
      %s33 = sphi 0, %s30
      %s34 = sphi 0, %s33
      %s50 = sphi 0, %s34
      %s54 = sphi 0, %s54
      %s56 = sphi 0, %s54
      %s57 = sphi 0, %s56
      %s71 = sphi 0, %s57
      %s75 = sphi 0, %s75
      %s77 = sphi 0, %s75
      %s78 = sphi 0, %s77
      %s92 = sphi 0, %s78
      %s96 = sphi 0, %s96
      %s98 = sphi 0, %s96
      %s99 = sphi 0, %s98
      %s113 = sphi 0, %s99
      %s117 = sphi 0, %s117
      %s119 = sphi 0, %s117
      %s120 = sphi 0, %s119
      %s134 = sphi 0, %s120
      %s138 = sphi 0, %s138
      %s140 = sphi 0, %s138
      %s141 = sphi 0, %s140
      %s155 = sphi 0, %s141
      %s159 = sphi 0, %s159
      %s161 = sphi 0, %s159
      %s162 = sphi 0, %s161
      %s176 = sphi 0, %s162
      %s182 = sphi 0, %s184
      %s185 = sphi 0, %s182
      %s186 = sphi 0, %s185
      %s202 = sphi 0, %s186
    $region4: #{tpu_custom_call.1} parent=1 // loop_header_branch
      %23 = sbr.rel (%p21) target = $region8
    $region5: #{tpu_custom_call.1} parent=1 // loop_body
      %s25 = ssub.s32 %s20, 1
      %s26 = ssub.s32 %s20, 2
      %s27 = sadd.s32 %s20, 1
      %s28 = ssub.s32 %s20, %s27
      %p29 = scmp.eq.s32.totalorder %s28, 0
      %s31 = sadd.s32 %s30, 1
      %s32 = scalar_select %p29, %s30, %s31
      %p35 = pneg %p29
      %p36 = scmp.eq.s32.totalorder %s20, 1
      %p37 = por %p35, %p36
      %p38 = scmp.ne.s32.totalorder %s30, %s33
      %p39 = scmp.eq.s32.totalorder %s20, 0
      %p40 = por %p38, %p39
      %p41 = scmp.ne.s32.totalorder %s30, %s33
      %p42 = scmp.eq.s32.totalorder %s25, 1
      %p43 = por %p41, %p42
      %p44 = scmp.ne.s32.totalorder %s33, %s34
      %p45 = scmp.eq.s32.totalorder %s25, 0
      %p46 = por %p44, %p45
      %p47 = scmp.ne.s32.totalorder %s33, %s34
      %p48 = scmp.eq.s32.totalorder %s26, 1
      %p49 = por %p47, %p48
      %p51 = scmp.ne.s32.totalorder %s34, %s50
      %p52 = scmp.eq.s32.totalorder %s26, 0
      %p53 = por %p51, %p52
      %s55 = sadd.s32 %s54, 1
      %p58 = scmp.eq.s32.totalorder %s20, 1
      %p59 = scmp.ne.s32.totalorder %s54, %s56
      %p60 = scmp.eq.s32.totalorder %s20, 0
      %p61 = por %p59, %p60
      %p62 = scmp.ne.s32.totalorder %s54, %s56
      %p63 = scmp.eq.s32.totalorder %s25, 1
      %p64 = por %p62, %p63
      %p65 = scmp.ne.s32.totalorder %s56, %s57
      %p66 = scmp.eq.s32.totalorder %s25, 0
      %p67 = por %p65, %p66
      %p68 = scmp.ne.s32.totalorder %s56, %s57
      %p69 = scmp.eq.s32.totalorder %s26, 1
      %p70 = por %p68, %p69
      %p72 = scmp.ne.s32.totalorder %s57, %s71
      %p73 = scmp.eq.s32.totalorder %s26, 0
      %p74 = por %p72, %p73
      %s76 = sadd.s32 %s75, 1
      %p79 = scmp.eq.s32.totalorder %s20, 1
      %p80 = scmp.ne.s32.totalorder %s75, %s77
      %p81 = scmp.eq.s32.totalorder %s20, 0
      %p82 = por %p80, %p81
      %p83 = scmp.ne.s32.totalorder %s75, %s77
      %p84 = scmp.eq.s32.totalorder %s25, 1
      %p85 = por %p83, %p84
      %p86 = scmp.ne.s32.totalorder %s77, %s78
      %p87 = scmp.eq.s32.totalorder %s25, 0
      %p88 = por %p86, %p87
      %p89 = scmp.ne.s32.totalorder %s77, %s78
      %p90 = scmp.eq.s32.totalorder %s26, 1
      %p91 = por %p89, %p90
      %p93 = scmp.ne.s32.totalorder %s78, %s92
      %p94 = scmp.eq.s32.totalorder %s26, 0
      %p95 = por %p93, %p94
      %s97 = sadd.s32 %s96, 1
      %p100 = scmp.eq.s32.totalorder %s20, 1
      %p101 = scmp.ne.s32.totalorder %s96, %s98
      %p102 = scmp.eq.s32.totalorder %s20, 0
      %p103 = por %p101, %p102
      %p104 = scmp.ne.s32.totalorder %s96, %s98
      %p105 = scmp.eq.s32.totalorder %s25, 1
      %p106 = por %p104, %p105
      %p107 = scmp.ne.s32.totalorder %s98, %s99
      %p108 = scmp.eq.s32.totalorder %s25, 0
      %p109 = por %p107, %p108
      %p110 = scmp.ne.s32.totalorder %s98, %s99
      %p111 = scmp.eq.s32.totalorder %s26, 1
      %p112 = por %p110, %p111
      %p114 = scmp.ne.s32.totalorder %s99, %s113
      %p115 = scmp.eq.s32.totalorder %s26, 0
      %p116 = por %p114, %p115
      %s118 = sadd.s32 %s117, 1
      %p121 = scmp.eq.s32.totalorder %s20, 1
      %p122 = scmp.ne.s32.totalorder %s117, %s119
      %p123 = scmp.eq.s32.totalorder %s20, 0
      %p124 = por %p122, %p123
      %p125 = scmp.ne.s32.totalorder %s117, %s119
      %p126 = scmp.eq.s32.totalorder %s25, 1
      %p127 = por %p125, %p126
      %p128 = scmp.ne.s32.totalorder %s119, %s120
      %p129 = scmp.eq.s32.totalorder %s25, 0
      %p130 = por %p128, %p129
      %p131 = scmp.ne.s32.totalorder %s119, %s120
      %p132 = scmp.eq.s32.totalorder %s26, 1
      %p133 = por %p131, %p132
      %p135 = scmp.ne.s32.totalorder %s120, %s134
      %p136 = scmp.eq.s32.totalorder %s26, 0
      %p137 = por %p135, %p136
      %s139 = sadd.s32 %s138, 1
      %p142 = scmp.eq.s32.totalorder %s20, 1
      %p143 = scmp.ne.s32.totalorder %s138, %s140
      %p144 = scmp.eq.s32.totalorder %s20, 0
      %p145 = por %p143, %p144
      %p146 = scmp.ne.s32.totalorder %s138, %s140
      %p147 = scmp.eq.s32.totalorder %s25, 1
      %p148 = por %p146, %p147
      %p149 = scmp.ne.s32.totalorder %s140, %s141
      %p150 = scmp.eq.s32.totalorder %s25, 0
      %p151 = por %p149, %p150
      %p152 = scmp.ne.s32.totalorder %s140, %s141
      %p153 = scmp.eq.s32.totalorder %s26, 1
      %p154 = por %p152, %p153
      %p156 = scmp.ne.s32.totalorder %s141, %s155
      %p157 = scmp.eq.s32.totalorder %s26, 0
      %p158 = por %p156, %p157
      %s160 = sadd.s32 %s159, 1
      %p163 = scmp.eq.s32.totalorder %s20, 1
      %p164 = scmp.ne.s32.totalorder %s159, %s161
      %p165 = scmp.eq.s32.totalorder %s20, 0
      %p166 = por %p164, %p165
      %p167 = scmp.ne.s32.totalorder %s159, %s161
      %p168 = scmp.eq.s32.totalorder %s25, 1
      %p169 = por %p167, %p168
      %p170 = scmp.ne.s32.totalorder %s161, %s162
      %p171 = scmp.eq.s32.totalorder %s25, 0
      %p172 = por %p170, %p171
      %p173 = scmp.ne.s32.totalorder %s161, %s162
      %p174 = scmp.eq.s32.totalorder %s26, 1
      %p175 = por %p173, %p174
      %p177 = scmp.ne.s32.totalorder %s162, %s176
      %p178 = scmp.eq.s32.totalorder %s26, 0
      %p179 = por %p177, %p178
      %s180 = ssub.s32 %s20, %s27
      %p181 = scmp.eq.s32.totalorder %s180, 0
      %s183 = sadd.s32 %s182, 1
      %s184 = scalar_select %p181, %s182, %s183
      %p187 = pneg %p181
      %p188 = scmp.eq.s32.totalorder %s20, 1
      %p189 = por %p187, %p188
      %p190 = scmp.ne.s32.totalorder %s182, %s185
      %p191 = scmp.eq.s32.totalorder %s20, 0
      %p192 = por %p190, %p191
      %p193 = scmp.ne.s32.totalorder %s182, %s185
      %p194 = scmp.eq.s32.totalorder %s25, 1
      %p195 = por %p193, %p194
      %p196 = scmp.ne.s32.totalorder %s185, %s186
      %p197 = scmp.eq.s32.totalorder %s25, 0
      %p198 = por %p196, %p197
      %p199 = scmp.ne.s32.totalorder %s185, %s186
      %p200 = scmp.eq.s32.totalorder %s26, 1
      %p201 = por %p199, %p200
      %p203 = scmp.ne.s32.totalorder %s186, %s202
      %p204 = scmp.eq.s32.totalorder %s26, 0
      %p205 = por %p203, %p204
      %p206 = scmp.le.s32.totalorder 1, %s20
      %p207 = scmp.lt.s32.totalorder %s20, 3
      %p208 = pnand %p206, %p207
      %p209 = pneg %p208
      // Predicated region
      $region9: #{tpu_custom_call.1} parent=5 // pred_check
        _
      $region10: #{tpu_custom_call.1} parent=5 // pred_check_branch
        %211 = sbr.rel (%p208) target = $region12
      $region11: #{tpu_custom_call.1} parent=5 // pred_region
        %s212 = ssub.s32 %s20, 1
        // Predicated region
        $region13: #{tpu_custom_call.1} parent=11 // pred_check
          %p213 = pneg %p67
        $region14: #{tpu_custom_call.1} parent=11 // pred_check_branch
          %215 = sbr.rel (%p213) target = $region16
        $region15: #{tpu_custom_call.1} parent=11 // pred_region
          %217 = vsyncadd [#allocation6], 0
          %s218 = sshll.u32 %s1, 4
          %s219 = int_to_ptr.hbm [resolvable:$true] %s218
          %s220 = sshll.u32 [#allocation5], 4
          %s221 = int_to_ptr.vmem [resolvable:$true] %s220
          %226 = dma.hbm_to_vmem [thread:$0]  %s219, 18432, %s221, [#allocation6], 192, 192, 12
        $region16: #{tpu_custom_call.1} parent=11 // pred_fallthru
          _
        // Predicated region
        $region17: #{tpu_custom_call.1} parent=11 // pred_check
          %p227 = pneg %p88
        $region18: #{tpu_custom_call.1} parent=11 // pred_check_branch
          %229 = sbr.rel (%p227) target = $region20
        $region19: #{tpu_custom_call.1} parent=11 // pred_region
          _
        $region20: #{tpu_custom_call.1} parent=11 // pred_fallthru
          _
        // Predicated region
        $region21: #{tpu_custom_call.1} parent=11 // pred_check
          %p230 = pneg %p109
        $region22: #{tpu_custom_call.1} parent=11 // pred_check_branch
          %232 = sbr.rel (%p230) target = $region24
        $region23: #{tpu_custom_call.1} parent=11 // pred_region
          _
        $region24: #{tpu_custom_call.1} parent=11 // pred_fallthru
          _
        // Predicated region
        $region25: #{tpu_custom_call.1} parent=11 // pred_check
          %p233 = pneg %p130
        $region26: #{tpu_custom_call.1} parent=11 // pred_check_branch
          %235 = sbr.rel (%p233) target = $region28
        $region27: #{tpu_custom_call.1} parent=11 // pred_region
          _
        $region28: #{tpu_custom_call.1} parent=11 // pred_fallthru
          _
        // Predicated region
        $region29: #{tpu_custom_call.1} parent=11 // pred_check
          %p236 = pneg %p151
        $region30: #{tpu_custom_call.1} parent=11 // pred_check_branch
          %238 = sbr.rel (%p236) target = $region32
        $region31: #{tpu_custom_call.1} parent=11 // pred_region
          _
        $region32: #{tpu_custom_call.1} parent=11 // pred_fallthru
          _
        // Predicated region
        $region33: #{tpu_custom_call.1} parent=11 // pred_check
          %p239 = pneg %p172
        $region34: #{tpu_custom_call.1} parent=11 // pred_check_branch
          %241 = sbr.rel (%p239) target = $region36
        $region35: #{tpu_custom_call.1} parent=11 // pred_region
          _
        $region36: #{tpu_custom_call.1} parent=11 // pred_fallthru
          _
      $region12: #{tpu_custom_call.1} parent=5 // pred_fallthru
        _
      %p242 = scmp.lt.s32.totalorder %s20, 2
      // Predicated region
      $region37: #{tpu_custom_call.1} parent=5 // pred_check
        %p243 = pneg %p242
      $region38: #{tpu_custom_call.1} parent=5 // pred_check_branch
        %245 = sbr.rel (%p243) target = $region40
      $region39: #{tpu_custom_call.1} parent=5 // pred_region
        // Predicated region
        $region41: #{tpu_custom_call.1} parent=39 // pred_check
          %p246 = pneg %p40
        $region42: #{tpu_custom_call.1} parent=39 // pred_check_branch
          %248 = sbr.rel (%p246) target = $region44
        $region43: #{tpu_custom_call.1} parent=39 // pred_region
          %s249 = sand.u32 %s30, 1
          %s250 = scalar_lea.sflag [#allocation3], %s249
          %s251 = sand.u32 %s30, 1
          %s252 = smul.addr %s251, 384
          %s253 = scalar_lea.vmem [#allocation2], %s252
          %s254 = smul.u32 16, %s20
          %256 = vsyncadd %s250, 0
          %s257 = smul.addr %s254, 6
          %s258 = smul.addr %s257, 4
          %s259 = scalar_lea.hbm %s0, %s258
          %s260 = sshll.u32 %s259, 4
          %s261 = int_to_ptr.hbm [resolvable:$true] %s260
          %s262 = sshll.u32 %s253, 4
          %s263 = int_to_ptr.vmem [resolvable:$true] %s262
          %268 = dma.hbm_to_vmem [thread:$0]  %s261, 6144, %s263, %s250, 384, 384, 24
        $region44: #{tpu_custom_call.1} parent=39 // pred_fallthru
          _
      $region40: #{tpu_custom_call.1} parent=5 // pred_fallthru
        _
      %p269 = scmp.le.s32.totalorder 1, %s20
      %p270 = scmp.lt.s32.totalorder %s20, 3
      %p271 = pnand %p269, %p270
      %p272 = pneg %p271
      // Predicated region
      $region45: #{tpu_custom_call.1} parent=5 // pred_check
        _
      $region46: #{tpu_custom_call.1} parent=5 // pred_check_branch
        %274 = sbr.rel (%p271) target = $region48
      $region47: #{tpu_custom_call.1} parent=5 // pred_region
        %s275 = ssub.s32 %s20, 1
        %s276 = sand.u32 %s33, 1
        %s277 = scalar_lea.sflag [#allocation3], %s276
        %s278 = sand.u32 %s33, 1
        %s279 = smul.addr %s278, 384
        %s280 = scalar_lea.vmem [#allocation2], %s279
        // Predicated region
        $region49: #{tpu_custom_call.1} parent=47 // pred_check
          %p281 = pneg %p46
        $region50: #{tpu_custom_call.1} parent=47 // pred_check_branch
          %283 = sbr.rel (%p281) target = $region52
        $region51: #{tpu_custom_call.1} parent=47 // pred_region
          %285 = dma.done %s277, 6144
        $region52: #{tpu_custom_call.1} parent=47 // pred_fallthru
          _
        // Predicated region
        $region53: #{tpu_custom_call.1} parent=47 // pred_check
          %p286 = pneg %p67
        $region54: #{tpu_custom_call.1} parent=47 // pred_check_branch
          %288 = sbr.rel (%p286) target = $region56
        $region55: #{tpu_custom_call.1} parent=47 // pred_region
          %290 = dma.done [#allocation6], 18432
        $region56: #{tpu_custom_call.1} parent=47 // pred_fallthru
          _
        %s291 = sand.u32 %s33, 1
        %s292 = scalar_lea.sflag [#allocation3], %s291
        %s293 = sand.u32 %s33, 1
        %s294 = smul.addr %s293, 384
        %s295 = scalar_lea.vmem [#allocation2], %s294
        %p296 = pneg %p46
        %p297 = pneg %p43
        %p298 = pneg %p67
        %p299 = pneg %p64
        %p300 = pneg %p88
        %p301 = pneg %p85
        %p302 = pneg %p109
        %p303 = pneg %p106
        %p304 = pneg %p130
        %p305 = pneg %p127
        %p306 = pneg %p151
        %p307 = pneg %p148
        %p308 = pneg %p172
        %p309 = pneg %p169
        %p310 = pneg %p198
        %p311 = pneg %p195
        %s312 = sand.u32 %s185, 1
        %s313 = scalar_lea.sflag [#allocation4], %s312
        %s314 = sand.u32 %s185, 1
        %s315 = smul.addr %s314, 128
        %s316 = scalar_lea.vmem [#allocation7], %s315
        %s317 = smul.u32 16, %s25
        %s318 = smul.u32 16, %s25
        %v320 = vld [vmem:[%s280] sm:$0xff]
        %v321 = vld [vmem:[%s280 + $0x8] sm:$0xff]
        %v322 = vld [vmem:[%s280 + $0x10] sm:$0xff]
        %v323 = vld [vmem:[%s280 + $0x18] sm:$0xff]
        %v324 = vld [vmem:[%s280 + $0x20] sm:$0xff]
        %v325 = vld [vmem:[%s280 + $0x28] sm:$0xff]
        %v326 = vld [vmem:[%s280 + $0x30] sm:$0xff]
        %v327 = vld [vmem:[%s280 + $0x38] sm:$0xff]
        %v328 = vld [vmem:[%s280 + $0x40] sm:$0xff]
        %v329 = vld [vmem:[%s280 + $0x48] sm:$0xff]
        %v330 = vld [vmem:[%s280 + $0x50] sm:$0xff]
        %v331 = vld [vmem:[%s280 + $0x58] sm:$0xff]
        %v332 = vld [vmem:[%s280 + $0x60] sm:$0xff]
        %v333 = vld [vmem:[%s280 + $0x68] sm:$0xff]
        %v334 = vld [vmem:[%s280 + $0x70] sm:$0xff]
        %v335 = vld [vmem:[%s280 + $0x78] sm:$0xff]
        %v336 = vld [vmem:[%s280 + $0x80] sm:$0xff]
        %v337 = vld [vmem:[%s280 + $0x88] sm:$0xff]
        %v338 = vld [vmem:[%s280 + $0x90] sm:$0xff]
        %v339 = vld [vmem:[%s280 + $0x98] sm:$0xff]
        %v340 = vld [vmem:[%s280 + $0xa0] sm:$0xff]
        %v341 = vld [vmem:[%s280 + $0xa8] sm:$0xff]
        %v342 = vld [vmem:[%s280 + $0xb0] sm:$0xff]
        %v343 = vld [vmem:[%s280 + $0xb8] sm:$0xff]
        %v344 = vld [vmem:[%s280 + $0xc0] sm:$0xff]
        %v345 = vld [vmem:[%s280 + $0xc8] sm:$0xff]
        %v346 = vld [vmem:[%s280 + $0xd0] sm:$0xff]
        %v347 = vld [vmem:[%s280 + $0xd8] sm:$0xff]
        %v348 = vld [vmem:[%s280 + $0xe0] sm:$0xff]
        %v349 = vld [vmem:[%s280 + $0xe8] sm:$0xff]
        %v350 = vld [vmem:[%s280 + $0xf0] sm:$0xff]
        %v351 = vld [vmem:[%s280 + $0xf8] sm:$0xff]
        %v352 = vld [vmem:[%s280 + $0x100] sm:$0xff]
        %v353 = vld [vmem:[%s280 + $0x108] sm:$0xff]
        %v354 = vld [vmem:[%s280 + $0x110] sm:$0xff]
        %v355 = vld [vmem:[%s280 + $0x118] sm:$0xff]
        %v356 = vld [vmem:[%s280 + $0x120] sm:$0xff]
        %v357 = vld [vmem:[%s280 + $0x128] sm:$0xff]
        %v358 = vld [vmem:[%s280 + $0x130] sm:$0xff]
        %v359 = vld [vmem:[%s280 + $0x138] sm:$0xff]
        %v360 = vld [vmem:[%s280 + $0x140] sm:$0xff]
        %v361 = vld [vmem:[%s280 + $0x148] sm:$0xff]
        %v362 = vld [vmem:[%s280 + $0x150] sm:$0xff]
        %v363 = vld [vmem:[%s280 + $0x158] sm:$0xff]
        %v364 = vld [vmem:[%s280 + $0x160] sm:$0xff]
        %v365 = vld [vmem:[%s280 + $0x168] sm:$0xff]
        %v366 = vld [vmem:[%s280 + $0x170] sm:$0xff]
        %v367 = vld [vmem:[%s280 + $0x178] sm:$0xff]
        %v368 = vld [vmem:[#allocation5] sm:$0xff]
        %v369 = vld [vmem:[#allocation5 + $0x8] sm:$0xf]
        %v370 = vld [vmem:[#allocation5 + $0xc] sm:$0xff]
        %v371 = vld [vmem:[#allocation5 + $0x14] sm:$0xf]
        %v372 = vld [vmem:[#allocation5 + $0x18] sm:$0xff]
        %v373 = vld [vmem:[#allocation5 + $0x20] sm:$0xf]
        %v374 = vld [vmem:[#allocation5 + $0x24] sm:$0xff]
        %v375 = vld [vmem:[#allocation5 + $0x2c] sm:$0xf]
        %v376 = vld [vmem:[#allocation5 + $0x30] sm:$0xff]
        %v377 = vld [vmem:[#allocation5 + $0x38] sm:$0xf]
        %v378 = vld [vmem:[#allocation5 + $0x3c] sm:$0xff]
        %v379 = vld [vmem:[#allocation5 + $0x44] sm:$0xf]
        %v380 = vld [vmem:[#allocation5 + $0x48] sm:$0xff]
        %v381 = vld [vmem:[#allocation5 + $0x50] sm:$0xf]
        %v382 = vld [vmem:[#allocation5 + $0x54] sm:$0xff]
        %v383 = vld [vmem:[#allocation5 + $0x5c] sm:$0xf]
        %v384 = vld [vmem:[#allocation5 + $0x60] sm:$0xff]
        %v385 = vld [vmem:[#allocation5 + $0x68] sm:$0xf]
        %v386 = vld [vmem:[#allocation5 + $0x6c] sm:$0xff]
        %v387 = vld [vmem:[#allocation5 + $0x74] sm:$0xf]
        %v388 = vld [vmem:[#allocation5 + $0x78] sm:$0xff]
        %v389 = vld [vmem:[#allocation5 + $0x80] sm:$0xf]
        %v390 = vld [vmem:[#allocation5 + $0x84] sm:$0xff]
        %v391 = vld [vmem:[#allocation5 + $0x8c] sm:$0xf]
        %v392 = vld [vmem:[#allocation5 + $0x90] sm:$0xff]
        %v393 = vld [vmem:[#allocation5 + $0x98] sm:$0xf]
        %v394 = vld [vmem:[#allocation5 + $0x9c] sm:$0xff]
        %v395 = vld [vmem:[#allocation5 + $0xa4] sm:$0xf]
        %v396 = vld [vmem:[#allocation5 + $0xa8] sm:$0xff]
        %v397 = vld [vmem:[#allocation5 + $0xb0] sm:$0xf]
        %v398 = vld [vmem:[#allocation5 + $0xb4] sm:$0xff]
        %v399 = vld [vmem:[#allocation5 + $0xbc] sm:$0xf]
        %v400 = vld [vmem:[#allocation5 + $0xc0] sm:$0xff]
        %v401 = vld [vmem:[#allocation5 + $0xc8] sm:$0xf]
        %v402 = vld [vmem:[#allocation5 + $0xcc] sm:$0xff]
        %v403 = vld [vmem:[#allocation5 + $0xd4] sm:$0xf]
        %v404 = vld [vmem:[#allocation5 + $0xd8] sm:$0xff]
        %v405 = vld [vmem:[#allocation5 + $0xe0] sm:$0xf]
        %v406 = vld [vmem:[#allocation5 + $0xe4] sm:$0xff]
        %v407 = vld [vmem:[#allocation5 + $0xec] sm:$0xf]
        %v408 = vld [vmem:[#allocation5 + $0xf0] sm:$0xff]
        %v409 = vld [vmem:[#allocation5 + $0xf8] sm:$0xf]
        %v410 = vld [vmem:[#allocation5 + $0xfc] sm:$0xff]
        %v411 = vld [vmem:[#allocation5 + $0x104] sm:$0xf]
        %v412 = vld [vmem:[#allocation5 + $0x108] sm:$0xff]
        %v413 = vld [vmem:[#allocation5 + $0x110] sm:$0xf]
        %v414 = vld [vmem:[#allocation5 + $0x114] sm:$0xff]
        %v415 = vld [vmem:[#allocation5 + $0x11c] sm:$0xf]
        %v416 = vld [vmem:[#allocation5 + $0x120] sm:$0xff]
        %v417 = vld [vmem:[#allocation5 + $0x128] sm:$0xf]
        %v418 = vld [vmem:[#allocation5 + $0x12c] sm:$0xff]
        %v419 = vld [vmem:[#allocation5 + $0x134] sm:$0xf]
        %v420 = vld [vmem:[#allocation5 + $0x138] sm:$0xff]
        %v421 = vld [vmem:[#allocation5 + $0x140] sm:$0xf]
        %v422 = vld [vmem:[#allocation5 + $0x144] sm:$0xff]
        %v423 = vld [vmem:[#allocation5 + $0x14c] sm:$0xf]
        %v424 = vld [vmem:[#allocation5 + $0x150] sm:$0xff]
        %v425 = vld [vmem:[#allocation5 + $0x158] sm:$0xf]
        %v426 = vld [vmem:[#allocation5 + $0x15c] sm:$0xff]
        %v427 = vld [vmem:[#allocation5 + $0x164] sm:$0xf]
        %v428 = vld [vmem:[#allocation5 + $0x168] sm:$0xff]
        %v429 = vld [vmem:[#allocation5 + $0x170] sm:$0xf]
        %v430 = vld [vmem:[#allocation5 + $0x174] sm:$0xff]
        %v431 = vld [vmem:[#allocation5 + $0x17c] sm:$0xf]
        %v432 = vld [vmem:[#allocation5 + $0x180] sm:$0xff]
        %v433 = vld [vmem:[#allocation5 + $0x188] sm:$0xf]
        %v434 = vld [vmem:[#allocation5 + $0x18c] sm:$0xff]
        %v435 = vld [vmem:[#allocation5 + $0x194] sm:$0xf]
        %v436 = vld [vmem:[#allocation5 + $0x198] sm:$0xff]
        %v437 = vld [vmem:[#allocation5 + $0x1a0] sm:$0xf]
        %v438 = vld [vmem:[#allocation5 + $0x1a4] sm:$0xff]
        %v439 = vld [vmem:[#allocation5 + $0x1ac] sm:$0xf]
        %v440 = vld [vmem:[#allocation5 + $0x1b0] sm:$0xff]
        %v441 = vld [vmem:[#allocation5 + $0x1b8] sm:$0xf]
        %v442 = vld [vmem:[#allocation5 + $0x1bc] sm:$0xff]
        %v443 = vld [vmem:[#allocation5 + $0x1c4] sm:$0xf]
        %v444 = vld [vmem:[#allocation5 + $0x1c8] sm:$0xff]
        %v445 = vld [vmem:[#allocation5 + $0x1d0] sm:$0xf]
        %v446 = vld [vmem:[#allocation5 + $0x1d4] sm:$0xff]
        %v447 = vld [vmem:[#allocation5 + $0x1dc] sm:$0xf]
        %v448 = vld [vmem:[#allocation5 + $0x1e0] sm:$0xff]
        %v449 = vld [vmem:[#allocation5 + $0x1e8] sm:$0xf]
        %v450 = vld [vmem:[#allocation5 + $0x1ec] sm:$0xff]
        %v451 = vld [vmem:[#allocation5 + $0x1f4] sm:$0xf]
        %v452 = vld [vmem:[#allocation5 + $0x1f8] sm:$0xff]
        %v453 = vld [vmem:[#allocation5 + $0x200] sm:$0xf]
        %v454 = vld [vmem:[#allocation5 + $0x204] sm:$0xff]
        %v455 = vld [vmem:[#allocation5 + $0x20c] sm:$0xf]
        %v456 = vld [vmem:[#allocation5 + $0x210] sm:$0xff]
        %v457 = vld [vmem:[#allocation5 + $0x218] sm:$0xf]
        %v458 = vld [vmem:[#allocation5 + $0x21c] sm:$0xff]
        %v459 = vld [vmem:[#allocation5 + $0x224] sm:$0xf]
        %v460 = vld [vmem:[#allocation5 + $0x228] sm:$0xff]
        %v461 = vld [vmem:[#allocation5 + $0x230] sm:$0xf]
        %v462 = vld [vmem:[#allocation5 + $0x234] sm:$0xff]
        %v463 = vld [vmem:[#allocation5 + $0x23c] sm:$0xf]
        %v464 = vld [vmem:[#allocation5 + $0x240] sm:$0xff]
        %v465 = vld [vmem:[#allocation5 + $0x248] sm:$0xf]
        %v466 = vld [vmem:[#allocation5 + $0x24c] sm:$0xff]
        %v467 = vld [vmem:[#allocation5 + $0x254] sm:$0xf]
        %v468 = vld [vmem:[#allocation5 + $0x258] sm:$0xff]
        %v469 = vld [vmem:[#allocation5 + $0x260] sm:$0xf]
        %v470 = vld [vmem:[#allocation5 + $0x264] sm:$0xff]
        %v471 = vld [vmem:[#allocation5 + $0x26c] sm:$0xf]
        %v472 = vld [vmem:[#allocation5 + $0x270] sm:$0xff]
        %v473 = vld [vmem:[#allocation5 + $0x278] sm:$0xf]
        %v474 = vld [vmem:[#allocation5 + $0x27c] sm:$0xff]
        %v475 = vld [vmem:[#allocation5 + $0x284] sm:$0xf]
        %v476 = vld [vmem:[#allocation5 + $0x288] sm:$0xff]
        %v477 = vld [vmem:[#allocation5 + $0x290] sm:$0xf]
        %v478 = vld [vmem:[#allocation5 + $0x294] sm:$0xff]
        %v479 = vld [vmem:[#allocation5 + $0x29c] sm:$0xf]
        %v480 = vld [vmem:[#allocation5 + $0x2a0] sm:$0xff]
        %v481 = vld [vmem:[#allocation5 + $0x2a8] sm:$0xf]
        %v482 = vld [vmem:[#allocation5 + $0x2ac] sm:$0xff]
        %v483 = vld [vmem:[#allocation5 + $0x2b4] sm:$0xf]
        %v484 = vld [vmem:[#allocation5 + $0x2b8] sm:$0xff]
        %v485 = vld [vmem:[#allocation5 + $0x2c0] sm:$0xf]
        %v486 = vld [vmem:[#allocation5 + $0x2c4] sm:$0xff]
        %v487 = vld [vmem:[#allocation5 + $0x2cc] sm:$0xf]
        %v488 = vld [vmem:[#allocation5 + $0x2d0] sm:$0xff]
        %v489 = vld [vmem:[#allocation5 + $0x2d8] sm:$0xf]
        %v490 = vld [vmem:[#allocation5 + $0x2dc] sm:$0xff]
        %v491 = vld [vmem:[#allocation5 + $0x2e4] sm:$0xf]
        %v492 = vld [vmem:[#allocation5 + $0x2e8] sm:$0xff]
        %v493 = vld [vmem:[#allocation5 + $0x2f0] sm:$0xf]
        %v494 = vld [vmem:[#allocation5 + $0x2f4] sm:$0xff]
        %v495 = vld [vmem:[#allocation5 + $0x2fc] sm:$0xf]
        %v496 = vld [vmem:[#allocation5 + $0x300] sm:$0xff]
        %v497 = vld [vmem:[#allocation5 + $0x308] sm:$0xf]
        %v498 = vld [vmem:[#allocation5 + $0x30c] sm:$0xff]
        %v499 = vld [vmem:[#allocation5 + $0x314] sm:$0xf]
        %v500 = vld [vmem:[#allocation5 + $0x318] sm:$0xff]
        %v501 = vld [vmem:[#allocation5 + $0x320] sm:$0xf]
        %v502 = vld [vmem:[#allocation5 + $0x324] sm:$0xff]
        %v503 = vld [vmem:[#allocation5 + $0x32c] sm:$0xf]
        %v504 = vld [vmem:[#allocation5 + $0x330] sm:$0xff]
        %v505 = vld [vmem:[#allocation5 + $0x338] sm:$0xf]
        %v506 = vld [vmem:[#allocation5 + $0x33c] sm:$0xff]
        %v507 = vld [vmem:[#allocation5 + $0x344] sm:$0xf]
        %v508 = vld [vmem:[#allocation5 + $0x348] sm:$0xff]
        %v509 = vld [vmem:[#allocation5 + $0x350] sm:$0xf]
        %v510 = vld [vmem:[#allocation5 + $0x354] sm:$0xff]
        %v511 = vld [vmem:[#allocation5 + $0x35c] sm:$0xf]
        %v512 = vld [vmem:[#allocation5 + $0x360] sm:$0xff]
        %v513 = vld [vmem:[#allocation5 + $0x368] sm:$0xf]
        %v514 = vld [vmem:[#allocation5 + $0x36c] sm:$0xff]
        %v515 = vld [vmem:[#allocation5 + $0x374] sm:$0xf]
        %v516 = vld [vmem:[#allocation5 + $0x378] sm:$0xff]
        %v517 = vld [vmem:[#allocation5 + $0x380] sm:$0xf]
        %v518 = vld [vmem:[#allocation5 + $0x384] sm:$0xff]
        %v519 = vld [vmem:[#allocation5 + $0x38c] sm:$0xf]
        %v520 = vld [vmem:[#allocation5 + $0x390] sm:$0xff]
        %v521 = vld [vmem:[#allocation5 + $0x398] sm:$0xf]
        %v522 = vld [vmem:[#allocation5 + $0x39c] sm:$0xff]
        %v523 = vld [vmem:[#allocation5 + $0x3a4] sm:$0xf]
        %v524 = vld [vmem:[#allocation5 + $0x3a8] sm:$0xff]
        %v525 = vld [vmem:[#allocation5 + $0x3b0] sm:$0xf]
        %v526 = vld [vmem:[#allocation5 + $0x3b4] sm:$0xff]
        %v527 = vld [vmem:[#allocation5 + $0x3bc] sm:$0xf]
        %v528 = vld [vmem:[#allocation5 + $0x3c0] sm:$0xff]
        %v529 = vld [vmem:[#allocation5 + $0x3c8] sm:$0xf]
        %v530 = vld [vmem:[#allocation5 + $0x3cc] sm:$0xff]
        %v531 = vld [vmem:[#allocation5 + $0x3d4] sm:$0xf]
        %v532 = vld [vmem:[#allocation5 + $0x3d8] sm:$0xff]
        %v533 = vld [vmem:[#allocation5 + $0x3e0] sm:$0xf]
        %v534 = vld [vmem:[#allocation5 + $0x3e4] sm:$0xff]
        %v535 = vld [vmem:[#allocation5 + $0x3ec] sm:$0xf]
        %v536 = vld [vmem:[#allocation5 + $0x3f0] sm:$0xff]
        %v537 = vld [vmem:[#allocation5 + $0x3f8] sm:$0xf]
        %v538 = vld [vmem:[#allocation5 + $0x3fc] sm:$0xff]
        %v539 = vld [vmem:[#allocation5 + $0x404] sm:$0xf]
        %v540 = vld [vmem:[#allocation5 + $0x408] sm:$0xff]
        %v541 = vld [vmem:[#allocation5 + $0x410] sm:$0xf]
        %v542 = vld [vmem:[#allocation5 + $0x414] sm:$0xff]
        %v543 = vld [vmem:[#allocation5 + $0x41c] sm:$0xf]
        %v544 = vld [vmem:[#allocation5 + $0x420] sm:$0xff]
        %v545 = vld [vmem:[#allocation5 + $0x428] sm:$0xf]
        %v546 = vld [vmem:[#allocation5 + $0x42c] sm:$0xff]
        %v547 = vld [vmem:[#allocation5 + $0x434] sm:$0xf]
        %v548 = vld [vmem:[#allocation5 + $0x438] sm:$0xff]
        %v549 = vld [vmem:[#allocation5 + $0x440] sm:$0xf]
        %v550 = vld [vmem:[#allocation5 + $0x444] sm:$0xff]
        %v551 = vld [vmem:[#allocation5 + $0x44c] sm:$0xf]
        %v552 = vld [vmem:[#allocation5 + $0x450] sm:$0xff]
        %v553 = vld [vmem:[#allocation5 + $0x458] sm:$0xf]
        %v554 = vld [vmem:[#allocation5 + $0x45c] sm:$0xff]
        %v555 = vld [vmem:[#allocation5 + $0x464] sm:$0xf]
        %v556 = vld [vmem:[#allocation5 + $0x468] sm:$0xff]
        %v557 = vld [vmem:[#allocation5 + $0x470] sm:$0xf]
        %v558 = vld [vmem:[#allocation5 + $0x474] sm:$0xff]
        %v559 = vld [vmem:[#allocation5 + $0x47c] sm:$0xf]
        %v560 = vld [vmem:[%s2] sm:$0x7]
        %v562 = vperm.slane %v560, 0
        %v563 = vperm.slane %v560, 1
        %v564 = vperm.slane %v560, 2
        %v616 = vunpack.c.l.b16 %v320
        %v617 = vunpack.c.h.b16 %v320
        %v618 = vunpack.c.l.b16 %v321
        %v619 = vunpack.c.h.b16 %v321
        %v620 = vunpack.c.l.b16 %v322
        %v621 = vunpack.c.h.b16 %v322
        %v622 = vunpack.c.l.b16 %v323
        %v623 = vunpack.c.h.b16 %v323
        %v624 = vunpack.c.l.b16 %v324
        %v625 = vunpack.c.h.b16 %v324
        %v626 = vunpack.c.l.b16 %v325
        %v627 = vunpack.c.h.b16 %v325
        %v628 = vunpack.c.l.b16 %v326
        %v629 = vunpack.c.h.b16 %v326
        %v630 = vunpack.c.l.b16 %v327
        %v631 = vunpack.c.h.b16 %v327
        %v632 = vunpack.c.l.b16 %v328
        %v633 = vunpack.c.h.b16 %v328
        %v634 = vunpack.c.l.b16 %v329
        %v635 = vunpack.c.h.b16 %v329
        %v636 = vunpack.c.l.b16 %v330
        %v637 = vunpack.c.h.b16 %v330
        %v638 = vunpack.c.l.b16 %v331
        %v639 = vunpack.c.h.b16 %v331
        %v640 = vunpack.c.l.b16 %v332
        %v641 = vunpack.c.h.b16 %v332
        %v642 = vunpack.c.l.b16 %v333
        %v643 = vunpack.c.h.b16 %v333
        %v644 = vunpack.c.l.b16 %v334
        %v645 = vunpack.c.h.b16 %v334
        %v646 = vunpack.c.l.b16 %v335
        %v647 = vunpack.c.h.b16 %v335
        %v648 = vunpack.c.l.b16 %v336
        %v649 = vunpack.c.h.b16 %v336
        %v650 = vunpack.c.l.b16 %v337
        %v651 = vunpack.c.h.b16 %v337
        %v652 = vunpack.c.l.b16 %v338
        %v653 = vunpack.c.h.b16 %v338
        %v654 = vunpack.c.l.b16 %v339
        %v655 = vunpack.c.h.b16 %v339
        %v656 = vunpack.c.l.b16 %v340
        %v657 = vunpack.c.h.b16 %v340
        %v658 = vunpack.c.l.b16 %v341
        %v659 = vunpack.c.h.b16 %v341
        %v660 = vunpack.c.l.b16 %v342
        %v661 = vunpack.c.h.b16 %v342
        %v662 = vunpack.c.l.b16 %v343
        %v663 = vunpack.c.h.b16 %v343
        %v664 = vunpack.c.l.b16 %v344
        %v665 = vunpack.c.h.b16 %v344
        %v666 = vunpack.c.l.b16 %v345
        %v667 = vunpack.c.h.b16 %v345
        %v668 = vunpack.c.l.b16 %v346
        %v669 = vunpack.c.h.b16 %v346
        %v670 = vunpack.c.l.b16 %v347
        %v671 = vunpack.c.h.b16 %v347
        %v672 = vunpack.c.l.b16 %v348
        %v673 = vunpack.c.h.b16 %v348
        %v674 = vunpack.c.l.b16 %v349
        %v675 = vunpack.c.h.b16 %v349
        %v676 = vunpack.c.l.b16 %v350
        %v677 = vunpack.c.h.b16 %v350
        %v678 = vunpack.c.l.b16 %v351
        %v679 = vunpack.c.h.b16 %v351
        %v680 = vunpack.c.l.b16 %v352
        %v681 = vunpack.c.h.b16 %v352
        %v682 = vunpack.c.l.b16 %v353
        %v683 = vunpack.c.h.b16 %v353
        %v684 = vunpack.c.l.b16 %v354
        %v685 = vunpack.c.h.b16 %v354
        %v686 = vunpack.c.l.b16 %v355
        %v687 = vunpack.c.h.b16 %v355
        %v688 = vunpack.c.l.b16 %v356
        %v689 = vunpack.c.h.b16 %v356
        %v690 = vunpack.c.l.b16 %v357
        %v691 = vunpack.c.h.b16 %v357
        %v692 = vunpack.c.l.b16 %v358
        %v693 = vunpack.c.h.b16 %v358
        %v694 = vunpack.c.l.b16 %v359
        %v695 = vunpack.c.h.b16 %v359
        %v696 = vunpack.c.l.b16 %v360
        %v697 = vunpack.c.h.b16 %v360
        %v698 = vunpack.c.l.b16 %v361
        %v699 = vunpack.c.h.b16 %v361
        %v700 = vunpack.c.l.b16 %v362
        %v701 = vunpack.c.h.b16 %v362
        %v702 = vunpack.c.l.b16 %v363
        %v703 = vunpack.c.h.b16 %v363
        %v704 = vunpack.c.l.b16 %v364
        %v705 = vunpack.c.h.b16 %v364
        %v706 = vunpack.c.l.b16 %v365
        %v707 = vunpack.c.h.b16 %v365
        %v708 = vunpack.c.l.b16 %v366
        %v709 = vunpack.c.h.b16 %v366
        %v710 = vunpack.c.l.b16 %v367
        %v711 = vunpack.c.h.b16 %v367
        %v712 = vpack.c.b16 %v622, %v616
        %v713 = vpack.c.b16 %v623, %v617
        %v714 = vpack.c.b16 %v624, %v618
        %v715 = vpack.c.b16 %v625, %v619
        %v716 = vpack.c.b16 %v626, %v620
        %v717 = vpack.c.b16 %v627, %v621
        %v718 = vpack.c.b16 %v634, %v628
        %v719 = vpack.c.b16 %v635, %v629
        %v720 = vpack.c.b16 %v636, %v630
        %v721 = vpack.c.b16 %v637, %v631
        %v722 = vpack.c.b16 %v638, %v632
        %v723 = vpack.c.b16 %v639, %v633
        %v724 = vpack.c.b16 %v646, %v640
        %v725 = vpack.c.b16 %v647, %v641
        %v726 = vpack.c.b16 %v648, %v642
        %v727 = vpack.c.b16 %v649, %v643
        %v728 = vpack.c.b16 %v650, %v644
        %v729 = vpack.c.b16 %v651, %v645
        %v730 = vpack.c.b16 %v658, %v652
        %v731 = vpack.c.b16 %v659, %v653
        %v732 = vpack.c.b16 %v660, %v654
        %v733 = vpack.c.b16 %v661, %v655
        %v734 = vpack.c.b16 %v662, %v656
        %v735 = vpack.c.b16 %v663, %v657
        %v736 = vpack.c.b16 %v670, %v664
        %v737 = vpack.c.b16 %v671, %v665
        %v738 = vpack.c.b16 %v672, %v666
        %v739 = vpack.c.b16 %v673, %v667
        %v740 = vpack.c.b16 %v674, %v668
        %v741 = vpack.c.b16 %v675, %v669
        %v742 = vpack.c.b16 %v682, %v676
        %v743 = vpack.c.b16 %v683, %v677
        %v744 = vpack.c.b16 %v684, %v678
        %v745 = vpack.c.b16 %v685, %v679
        %v746 = vpack.c.b16 %v686, %v680
        %v747 = vpack.c.b16 %v687, %v681
        %v748 = vpack.c.b16 %v694, %v688
        %v749 = vpack.c.b16 %v695, %v689
        %v750 = vpack.c.b16 %v696, %v690
        %v751 = vpack.c.b16 %v697, %v691
        %v752 = vpack.c.b16 %v698, %v692
        %v753 = vpack.c.b16 %v699, %v693
        %v754 = vpack.c.b16 %v706, %v700
        %v755 = vpack.c.b16 %v707, %v701
        %v756 = vpack.c.b16 %v708, %v702
        %v757 = vpack.c.b16 %v709, %v703
        %v758 = vpack.c.b16 %v710, %v704
        %v759 = vpack.c.b16 %v711, %v705
        %v1000 = vunpack.c.l.b16 %v368
        %v1001 = vunpack.c.h.b16 %v368
        %v1002 = vunpack.c.l.b16 %v369
        %v1003 = vunpack.c.l.b16 %v370
        %v1004 = vunpack.c.h.b16 %v370
        %v1005 = vunpack.c.l.b16 %v371
        %v1006 = vunpack.c.l.b16 %v372
        %v1007 = vunpack.c.h.b16 %v372
        %v1008 = vunpack.c.l.b16 %v373
        %v1009 = vunpack.c.l.b16 %v374
        %v1010 = vunpack.c.h.b16 %v374
        %v1011 = vunpack.c.l.b16 %v375
        %v1012 = vunpack.c.l.b16 %v376
        %v1013 = vunpack.c.h.b16 %v376
        %v1014 = vunpack.c.l.b16 %v377
        %v1015 = vunpack.c.l.b16 %v378
        %v1016 = vunpack.c.h.b16 %v378
        %v1017 = vunpack.c.l.b16 %v379
        %v1018 = vunpack.c.l.b16 %v380
        %v1019 = vunpack.c.h.b16 %v380
        %v1020 = vunpack.c.l.b16 %v381
        %v1021 = vunpack.c.l.b16 %v382
        %v1022 = vunpack.c.h.b16 %v382
        %v1023 = vunpack.c.l.b16 %v383
        %v1024 = vunpack.c.l.b16 %v384
        %v1025 = vunpack.c.h.b16 %v384
        %v1026 = vunpack.c.l.b16 %v385
        %v1027 = vunpack.c.l.b16 %v386
        %v1028 = vunpack.c.h.b16 %v386
        %v1029 = vunpack.c.l.b16 %v387
        %v1030 = vunpack.c.l.b16 %v388
        %v1031 = vunpack.c.h.b16 %v388
        %v1032 = vunpack.c.l.b16 %v389
        %v1033 = vunpack.c.l.b16 %v390
        %v1034 = vunpack.c.h.b16 %v390
        %v1035 = vunpack.c.l.b16 %v391
        %v1036 = vunpack.c.l.b16 %v392
        %v1037 = vunpack.c.h.b16 %v392
        %v1038 = vunpack.c.l.b16 %v393
        %v1039 = vunpack.c.l.b16 %v394
        %v1040 = vunpack.c.h.b16 %v394
        %v1041 = vunpack.c.l.b16 %v395
        %v1042 = vunpack.c.l.b16 %v396
        %v1043 = vunpack.c.h.b16 %v396
        %v1044 = vunpack.c.l.b16 %v397
        %v1045 = vunpack.c.l.b16 %v398
        %v1046 = vunpack.c.h.b16 %v398
        %v1047 = vunpack.c.l.b16 %v399
        %v1048 = vunpack.c.l.b16 %v400
        %v1049 = vunpack.c.h.b16 %v400
        %v1050 = vunpack.c.l.b16 %v401
        %v1051 = vunpack.c.l.b16 %v402
        %v1052 = vunpack.c.h.b16 %v402
        %v1053 = vunpack.c.l.b16 %v403
        %v1054 = vunpack.c.l.b16 %v404
        %v1055 = vunpack.c.h.b16 %v404
        %v1056 = vunpack.c.l.b16 %v405
        %v1057 = vunpack.c.l.b16 %v406
        %v1058 = vunpack.c.h.b16 %v406
        %v1059 = vunpack.c.l.b16 %v407
        %v1060 = vunpack.c.l.b16 %v408
        %v1061 = vunpack.c.h.b16 %v408
        %v1062 = vunpack.c.l.b16 %v409
        %v1063 = vunpack.c.l.b16 %v410
        %v1064 = vunpack.c.h.b16 %v410
        %v1065 = vunpack.c.l.b16 %v411
        %v1066 = vunpack.c.l.b16 %v412
        %v1067 = vunpack.c.h.b16 %v412
        %v1068 = vunpack.c.l.b16 %v413
        %v1069 = vunpack.c.l.b16 %v414
        %v1070 = vunpack.c.h.b16 %v414
        %v1071 = vunpack.c.l.b16 %v415
        %v1072 = vunpack.c.l.b16 %v416
        %v1073 = vunpack.c.h.b16 %v416
        %v1074 = vunpack.c.l.b16 %v417
        %v1075 = vunpack.c.l.b16 %v418
        %v1076 = vunpack.c.h.b16 %v418
        %v1077 = vunpack.c.l.b16 %v419
        %v1078 = vunpack.c.l.b16 %v420
        %v1079 = vunpack.c.h.b16 %v420
        %v1080 = vunpack.c.l.b16 %v421
        %v1081 = vunpack.c.l.b16 %v422
        %v1082 = vunpack.c.h.b16 %v422
        %v1083 = vunpack.c.l.b16 %v423
        %v1084 = vunpack.c.l.b16 %v424
        %v1085 = vunpack.c.h.b16 %v424
        %v1086 = vunpack.c.l.b16 %v425
        %v1087 = vunpack.c.l.b16 %v426
        %v1088 = vunpack.c.h.b16 %v426
        %v1089 = vunpack.c.l.b16 %v427
        %v1090 = vunpack.c.l.b16 %v428
        %v1091 = vunpack.c.h.b16 %v428
        %v1092 = vunpack.c.l.b16 %v429
        %v1093 = vunpack.c.l.b16 %v430
        %v1094 = vunpack.c.h.b16 %v430
        %v1095 = vunpack.c.l.b16 %v431
        %v1096 = vunpack.c.l.b16 %v432
        %v1097 = vunpack.c.h.b16 %v432
        %v1098 = vunpack.c.l.b16 %v433
        %v1099 = vunpack.c.l.b16 %v434
        %v1100 = vunpack.c.h.b16 %v434
        %v1101 = vunpack.c.l.b16 %v435
        %v1102 = vunpack.c.l.b16 %v436
        %v1103 = vunpack.c.h.b16 %v436
        %v1104 = vunpack.c.l.b16 %v437
        %v1105 = vunpack.c.l.b16 %v438
        %v1106 = vunpack.c.h.b16 %v438
        %v1107 = vunpack.c.l.b16 %v439
        %v1108 = vunpack.c.l.b16 %v440
        %v1109 = vunpack.c.h.b16 %v440
        %v1110 = vunpack.c.l.b16 %v441
        %v1111 = vunpack.c.l.b16 %v442
        %v1112 = vunpack.c.h.b16 %v442
        %v1113 = vunpack.c.l.b16 %v443
        %v1114 = vunpack.c.l.b16 %v444
        %v1115 = vunpack.c.h.b16 %v444
        %v1116 = vunpack.c.l.b16 %v445
        %v1117 = vunpack.c.l.b16 %v446
        %v1118 = vunpack.c.h.b16 %v446
        %v1119 = vunpack.c.l.b16 %v447
        %v1120 = vunpack.c.l.b16 %v448
        %v1121 = vunpack.c.h.b16 %v448
        %v1122 = vunpack.c.l.b16 %v449
        %v1123 = vunpack.c.l.b16 %v450
        %v1124 = vunpack.c.h.b16 %v450
        %v1125 = vunpack.c.l.b16 %v451
        %v1126 = vunpack.c.l.b16 %v452
        %v1127 = vunpack.c.h.b16 %v452
        %v1128 = vunpack.c.l.b16 %v453
        %v1129 = vunpack.c.l.b16 %v454
        %v1130 = vunpack.c.h.b16 %v454
        %v1131 = vunpack.c.l.b16 %v455
        %v1132 = vunpack.c.l.b16 %v456
        %v1133 = vunpack.c.h.b16 %v456
        %v1134 = vunpack.c.l.b16 %v457
        %v1135 = vunpack.c.l.b16 %v458
        %v1136 = vunpack.c.h.b16 %v458
        %v1137 = vunpack.c.l.b16 %v459
        %v1138 = vunpack.c.l.b16 %v460
        %v1139 = vunpack.c.h.b16 %v460
        %v1140 = vunpack.c.l.b16 %v461
        %v1141 = vunpack.c.l.b16 %v462
        %v1142 = vunpack.c.h.b16 %v462
        %v1143 = vunpack.c.l.b16 %v463
        %v1144 = vunpack.c.l.b16 %v464
        %v1145 = vunpack.c.h.b16 %v464
        %v1146 = vunpack.c.l.b16 %v465
        %v1147 = vunpack.c.l.b16 %v466
        %v1148 = vunpack.c.h.b16 %v466
        %v1149 = vunpack.c.l.b16 %v467
        %v1150 = vunpack.c.l.b16 %v468
        %v1151 = vunpack.c.h.b16 %v468
        %v1152 = vunpack.c.l.b16 %v469
        %v1153 = vunpack.c.l.b16 %v470
        %v1154 = vunpack.c.h.b16 %v470
        %v1155 = vunpack.c.l.b16 %v471
        %v1156 = vunpack.c.l.b16 %v472
        %v1157 = vunpack.c.h.b16 %v472
        %v1158 = vunpack.c.l.b16 %v473
        %v1159 = vunpack.c.l.b16 %v474
        %v1160 = vunpack.c.h.b16 %v474
        %v1161 = vunpack.c.l.b16 %v475
        %v1162 = vunpack.c.l.b16 %v476
        %v1163 = vunpack.c.h.b16 %v476
        %v1164 = vunpack.c.l.b16 %v477
        %v1165 = vunpack.c.l.b16 %v478
        %v1166 = vunpack.c.h.b16 %v478
        %v1167 = vunpack.c.l.b16 %v479
        %v1168 = vunpack.c.l.b16 %v480
        %v1169 = vunpack.c.h.b16 %v480
        %v1170 = vunpack.c.l.b16 %v481
        %v1171 = vunpack.c.l.b16 %v482
        %v1172 = vunpack.c.h.b16 %v482
        %v1173 = vunpack.c.l.b16 %v483
        %v1174 = vunpack.c.l.b16 %v484
        %v1175 = vunpack.c.h.b16 %v484
        %v1176 = vunpack.c.l.b16 %v485
        %v1177 = vunpack.c.l.b16 %v486
        %v1178 = vunpack.c.h.b16 %v486
        %v1179 = vunpack.c.l.b16 %v487
        %v1180 = vunpack.c.l.b16 %v488
        %v1181 = vunpack.c.h.b16 %v488
        %v1182 = vunpack.c.l.b16 %v489
        %v1183 = vunpack.c.l.b16 %v490
        %v1184 = vunpack.c.h.b16 %v490
        %v1185 = vunpack.c.l.b16 %v491
        %v1186 = vunpack.c.l.b16 %v492
        %v1187 = vunpack.c.h.b16 %v492
        %v1188 = vunpack.c.l.b16 %v493
        %v1189 = vunpack.c.l.b16 %v494
        %v1190 = vunpack.c.h.b16 %v494
        %v1191 = vunpack.c.l.b16 %v495
        %v1192 = vunpack.c.l.b16 %v496
        %v1193 = vunpack.c.h.b16 %v496
        %v1194 = vunpack.c.l.b16 %v497
        %v1195 = vunpack.c.l.b16 %v498
        %v1196 = vunpack.c.h.b16 %v498
        %v1197 = vunpack.c.l.b16 %v499
        %v1198 = vunpack.c.l.b16 %v500
        %v1199 = vunpack.c.h.b16 %v500
        %v1200 = vunpack.c.l.b16 %v501
        %v1201 = vunpack.c.l.b16 %v502
        %v1202 = vunpack.c.h.b16 %v502
        %v1203 = vunpack.c.l.b16 %v503
        %v1204 = vunpack.c.l.b16 %v504
        %v1205 = vunpack.c.h.b16 %v504
        %v1206 = vunpack.c.l.b16 %v505
        %v1207 = vunpack.c.l.b16 %v506
        %v1208 = vunpack.c.h.b16 %v506
        %v1209 = vunpack.c.l.b16 %v507
        %v1210 = vunpack.c.l.b16 %v508
        %v1211 = vunpack.c.h.b16 %v508
        %v1212 = vunpack.c.l.b16 %v509
        %v1213 = vunpack.c.l.b16 %v510
        %v1214 = vunpack.c.h.b16 %v510
        %v1215 = vunpack.c.l.b16 %v511
        %v1216 = vunpack.c.l.b16 %v512
        %v1217 = vunpack.c.h.b16 %v512
        %v1218 = vunpack.c.l.b16 %v513
        %v1219 = vunpack.c.l.b16 %v514
        %v1220 = vunpack.c.h.b16 %v514
        %v1221 = vunpack.c.l.b16 %v515
        %v1222 = vunpack.c.l.b16 %v516
        %v1223 = vunpack.c.h.b16 %v516
        %v1224 = vunpack.c.l.b16 %v517
        %v1225 = vunpack.c.l.b16 %v518
        %v1226 = vunpack.c.h.b16 %v518
        %v1227 = vunpack.c.l.b16 %v519
        %v1228 = vunpack.c.l.b16 %v520
        %v1229 = vunpack.c.h.b16 %v520
        %v1230 = vunpack.c.l.b16 %v521
        %v1231 = vunpack.c.l.b16 %v522
        %v1232 = vunpack.c.h.b16 %v522
        %v1233 = vunpack.c.l.b16 %v523
        %v1234 = vunpack.c.l.b16 %v524
        %v1235 = vunpack.c.h.b16 %v524
        %v1236 = vunpack.c.l.b16 %v525
        %v1237 = vunpack.c.l.b16 %v526
        %v1238 = vunpack.c.h.b16 %v526
        %v1239 = vunpack.c.l.b16 %v527
        %v1240 = vunpack.c.l.b16 %v528
        %v1241 = vunpack.c.h.b16 %v528
        %v1242 = vunpack.c.l.b16 %v529
        %v1243 = vunpack.c.l.b16 %v530
        %v1244 = vunpack.c.h.b16 %v530
        %v1245 = vunpack.c.l.b16 %v531
        %v1246 = vunpack.c.l.b16 %v532
        %v1247 = vunpack.c.h.b16 %v532
        %v1248 = vunpack.c.l.b16 %v533
        %v1249 = vunpack.c.l.b16 %v534
        %v1250 = vunpack.c.h.b16 %v534
        %v1251 = vunpack.c.l.b16 %v535
        %v1252 = vunpack.c.l.b16 %v536
        %v1253 = vunpack.c.h.b16 %v536
        %v1254 = vunpack.c.l.b16 %v537
        %v1255 = vunpack.c.l.b16 %v538
        %v1256 = vunpack.c.h.b16 %v538
        %v1257 = vunpack.c.l.b16 %v539
        %v1258 = vunpack.c.l.b16 %v540
        %v1259 = vunpack.c.h.b16 %v540
        %v1260 = vunpack.c.l.b16 %v541
        %v1261 = vunpack.c.l.b16 %v542
        %v1262 = vunpack.c.h.b16 %v542
        %v1263 = vunpack.c.l.b16 %v543
        %v1264 = vunpack.c.l.b16 %v544
        %v1265 = vunpack.c.h.b16 %v544
        %v1266 = vunpack.c.l.b16 %v545
        %v1267 = vunpack.c.l.b16 %v546
        %v1268 = vunpack.c.h.b16 %v546
        %v1269 = vunpack.c.l.b16 %v547
        %v1270 = vunpack.c.l.b16 %v548
        %v1271 = vunpack.c.h.b16 %v548
        %v1272 = vunpack.c.l.b16 %v549
        %v1273 = vunpack.c.l.b16 %v550
        %v1274 = vunpack.c.h.b16 %v550
        %v1275 = vunpack.c.l.b16 %v551
        %v1276 = vunpack.c.l.b16 %v552
        %v1277 = vunpack.c.h.b16 %v552
        %v1278 = vunpack.c.l.b16 %v553
        %v1279 = vunpack.c.l.b16 %v554
        %v1280 = vunpack.c.h.b16 %v554
        %v1281 = vunpack.c.l.b16 %v555
        %v1282 = vunpack.c.l.b16 %v556
        %v1283 = vunpack.c.h.b16 %v556
        %v1284 = vunpack.c.l.b16 %v557
        %v1285 = vunpack.c.l.b16 %v558
        %v1286 = vunpack.c.h.b16 %v558
        %v1287 = vunpack.c.l.b16 %v559
        %v1288 = vpack.c.b16 %v1003, %v1000
        %v1289 = vpack.c.b16 %v1004, %v1001
        %v1290 = vpack.c.b16 %v1005, %v1002
        %v1291 = vpack.c.b16 %v1009, %v1006
        %v1292 = vpack.c.b16 %v1010, %v1007
        %v1293 = vpack.c.b16 %v1011, %v1008
        %v1294 = vpack.c.b16 %v1015, %v1012
        %v1295 = vpack.c.b16 %v1016, %v1013
        %v1296 = vpack.c.b16 %v1017, %v1014
        %v1297 = vpack.c.b16 %v1021, %v1018
        %v1298 = vpack.c.b16 %v1022, %v1019
        %v1299 = vpack.c.b16 %v1023, %v1020
        %v1300 = vpack.c.b16 %v1027, %v1024
        %v1301 = vpack.c.b16 %v1028, %v1025
        %v1302 = vpack.c.b16 %v1029, %v1026
        %v1303 = vpack.c.b16 %v1033, %v1030
        %v1304 = vpack.c.b16 %v1034, %v1031
        %v1305 = vpack.c.b16 %v1035, %v1032
        %v1306 = vpack.c.b16 %v1039, %v1036
        %v1307 = vpack.c.b16 %v1040, %v1037
        %v1308 = vpack.c.b16 %v1041, %v1038
        %v1309 = vpack.c.b16 %v1045, %v1042
        %v1310 = vpack.c.b16 %v1046, %v1043
        %v1311 = vpack.c.b16 %v1047, %v1044
        %v1312 = vpack.c.b16 %v1051, %v1048
        %v1313 = vpack.c.b16 %v1052, %v1049
        %v1314 = vpack.c.b16 %v1053, %v1050
        %v1315 = vpack.c.b16 %v1057, %v1054
        %v1316 = vpack.c.b16 %v1058, %v1055
        %v1317 = vpack.c.b16 %v1059, %v1056
        %v1318 = vpack.c.b16 %v1063, %v1060
        %v1319 = vpack.c.b16 %v1064, %v1061
        %v1320 = vpack.c.b16 %v1065, %v1062
        %v1321 = vpack.c.b16 %v1069, %v1066
        %v1322 = vpack.c.b16 %v1070, %v1067
        %v1323 = vpack.c.b16 %v1071, %v1068
        %v1324 = vpack.c.b16 %v1075, %v1072
        %v1325 = vpack.c.b16 %v1076, %v1073
        %v1326 = vpack.c.b16 %v1077, %v1074
        %v1327 = vpack.c.b16 %v1081, %v1078
        %v1328 = vpack.c.b16 %v1082, %v1079
        %v1329 = vpack.c.b16 %v1083, %v1080
        %v1330 = vpack.c.b16 %v1087, %v1084
        %v1331 = vpack.c.b16 %v1088, %v1085
        %v1332 = vpack.c.b16 %v1089, %v1086
        %v1333 = vpack.c.b16 %v1093, %v1090
        %v1334 = vpack.c.b16 %v1094, %v1091
        %v1335 = vpack.c.b16 %v1095, %v1092
        %v1336 = vpack.c.b16 %v1099, %v1096
        %v1337 = vpack.c.b16 %v1100, %v1097
        %v1338 = vpack.c.b16 %v1101, %v1098
        %v1339 = vpack.c.b16 %v1105, %v1102
        %v1340 = vpack.c.b16 %v1106, %v1103
        %v1341 = vpack.c.b16 %v1107, %v1104
        %v1342 = vpack.c.b16 %v1111, %v1108
        %v1343 = vpack.c.b16 %v1112, %v1109
        %v1344 = vpack.c.b16 %v1113, %v1110
        %v1345 = vpack.c.b16 %v1117, %v1114
        %v1346 = vpack.c.b16 %v1118, %v1115
        %v1347 = vpack.c.b16 %v1119, %v1116
        %v1348 = vpack.c.b16 %v1123, %v1120
        %v1349 = vpack.c.b16 %v1124, %v1121
        %v1350 = vpack.c.b16 %v1125, %v1122
        %v1351 = vpack.c.b16 %v1129, %v1126
        %v1352 = vpack.c.b16 %v1130, %v1127
        %v1353 = vpack.c.b16 %v1131, %v1128
        %v1354 = vpack.c.b16 %v1135, %v1132
        %v1355 = vpack.c.b16 %v1136, %v1133
        %v1356 = vpack.c.b16 %v1137, %v1134
        %v1357 = vpack.c.b16 %v1141, %v1138
        %v1358 = vpack.c.b16 %v1142, %v1139
        %v1359 = vpack.c.b16 %v1143, %v1140
        %v1360 = vpack.c.b16 %v1147, %v1144
        %v1361 = vpack.c.b16 %v1148, %v1145
        %v1362 = vpack.c.b16 %v1149, %v1146
        %v1363 = vpack.c.b16 %v1153, %v1150
        %v1364 = vpack.c.b16 %v1154, %v1151
        %v1365 = vpack.c.b16 %v1155, %v1152
        %v1366 = vpack.c.b16 %v1159, %v1156
        %v1367 = vpack.c.b16 %v1160, %v1157
        %v1368 = vpack.c.b16 %v1161, %v1158
        %v1369 = vpack.c.b16 %v1165, %v1162
        %v1370 = vpack.c.b16 %v1166, %v1163
        %v1371 = vpack.c.b16 %v1167, %v1164
        %v1372 = vpack.c.b16 %v1171, %v1168
        %v1373 = vpack.c.b16 %v1172, %v1169
        %v1374 = vpack.c.b16 %v1173, %v1170
        %v1375 = vpack.c.b16 %v1177, %v1174
        %v1376 = vpack.c.b16 %v1178, %v1175
        %v1377 = vpack.c.b16 %v1179, %v1176
        %v1378 = vpack.c.b16 %v1183, %v1180
        %v1379 = vpack.c.b16 %v1184, %v1181
        %v1380 = vpack.c.b16 %v1185, %v1182
        %v1381 = vpack.c.b16 %v1189, %v1186
        %v1382 = vpack.c.b16 %v1190, %v1187
        %v1383 = vpack.c.b16 %v1191, %v1188
        %v1384 = vpack.c.b16 %v1195, %v1192
        %v1385 = vpack.c.b16 %v1196, %v1193
        %v1386 = vpack.c.b16 %v1197, %v1194
        %v1387 = vpack.c.b16 %v1201, %v1198
        %v1388 = vpack.c.b16 %v1202, %v1199
        %v1389 = vpack.c.b16 %v1203, %v1200
        %v1390 = vpack.c.b16 %v1207, %v1204
        %v1391 = vpack.c.b16 %v1208, %v1205
        %v1392 = vpack.c.b16 %v1209, %v1206
        %v1393 = vpack.c.b16 %v1213, %v1210
        %v1394 = vpack.c.b16 %v1214, %v1211
        %v1395 = vpack.c.b16 %v1215, %v1212
        %v1396 = vpack.c.b16 %v1219, %v1216
        %v1397 = vpack.c.b16 %v1220, %v1217
        %v1398 = vpack.c.b16 %v1221, %v1218
        %v1399 = vpack.c.b16 %v1225, %v1222
        %v1400 = vpack.c.b16 %v1226, %v1223
        %v1401 = vpack.c.b16 %v1227, %v1224
        %v1402 = vpack.c.b16 %v1231, %v1228
        %v1403 = vpack.c.b16 %v1232, %v1229
        %v1404 = vpack.c.b16 %v1233, %v1230
        %v1405 = vpack.c.b16 %v1237, %v1234
        %v1406 = vpack.c.b16 %v1238, %v1235
        %v1407 = vpack.c.b16 %v1239, %v1236
        %v1408 = vpack.c.b16 %v1243, %v1240
        %v1409 = vpack.c.b16 %v1244, %v1241
        %v1410 = vpack.c.b16 %v1245, %v1242
        %v1411 = vpack.c.b16 %v1249, %v1246
        %v1412 = vpack.c.b16 %v1250, %v1247
        %v1413 = vpack.c.b16 %v1251, %v1248
        %v1414 = vpack.c.b16 %v1255, %v1252
        %v1415 = vpack.c.b16 %v1256, %v1253
        %v1416 = vpack.c.b16 %v1257, %v1254
        %v1417 = vpack.c.b16 %v1261, %v1258
        %v1418 = vpack.c.b16 %v1262, %v1259
        %v1419 = vpack.c.b16 %v1263, %v1260
        %v1420 = vpack.c.b16 %v1267, %v1264
        %v1421 = vpack.c.b16 %v1268, %v1265
        %v1422 = vpack.c.b16 %v1269, %v1266
        %v1423 = vpack.c.b16 %v1273, %v1270
        %v1424 = vpack.c.b16 %v1274, %v1271
        %v1425 = vpack.c.b16 %v1275, %v1272
        %v1426 = vpack.c.b16 %v1279, %v1276
        %v1427 = vpack.c.b16 %v1280, %v1277
        %v1428 = vpack.c.b16 %v1281, %v1278
        %v1429 = vpack.c.b16 %v1285, %v1282
        %v1430 = vpack.c.b16 %v1286, %v1283
        %v1431 = vpack.c.b16 %v1287, %v1284
        %1576 = vmatpush.bf16.msra.mxu0 %v1309
        %1577 = vmatpush.bf16.msra.mxu0 %v1306
        %1578 = vmatpush.bf16.msra.mxu0 %v1303
        %1579 = vmatpush.bf16.msra.mxu0 %v1300
        %1580 = vmatpush.bf16.msra.mxu0 %v1297
        %1581 = vmatpush.bf16.msra.mxu0 %v1294
        %1582 = vmatpush.bf16.msra.mxu0 %v1291
        %1583 = vmatpush.bf16.msra.mxu0 %v1288
        %1584 = vmatmul.bf16.gmra.mxu0 %v712
        %v1585 = vpop.f32.mrf.mxu0
        %v1586 = vadd.f32 %v562, %v1585
        %v1587 = vpop.f32.mrf.mxu0
        %v1588 = vadd.f32 %v562, %v1587
        %1589 = vmatmul.bf16.gmra.mxu0 %v718
        %v1590 = vpop.f32.mrf.mxu0
        %v1591 = vadd.f32 %v562, %v1590
        %v1592 = vpop.f32.mrf.mxu0
        %v1593 = vadd.f32 %v562, %v1592
        %1594 = vmatmul.bf16.gmra.mxu0 %v724
        %v1595 = vpop.f32.mrf.mxu0
        %v1596 = vadd.f32 %v562, %v1595
        %v1597 = vpop.f32.mrf.mxu0
        %v1598 = vadd.f32 %v562, %v1597
        %1599 = vmatmul.bf16.gmra.mxu0 %v730
        %v1600 = vpop.f32.mrf.mxu0
        %v1601 = vadd.f32 %v562, %v1600
        %v1602 = vpop.f32.mrf.mxu0
        %v1603 = vadd.f32 %v562, %v1602
        %1604 = vmatmul.bf16.gmra.mxu0 %v736
        %v1605 = vpop.f32.mrf.mxu0
        %v1606 = vadd.f32 %v562, %v1605
        %v1607 = vpop.f32.mrf.mxu0
        %v1608 = vadd.f32 %v562, %v1607
        %1609 = vmatmul.bf16.gmra.mxu0 %v742
        %v1610 = vpop.f32.mrf.mxu0
        %v1611 = vadd.f32 %v562, %v1610
        %v1612 = vpop.f32.mrf.mxu0
        %v1613 = vadd.f32 %v562, %v1612
        %1614 = vmatmul.bf16.gmra.mxu0 %v748
        %v1615 = vpop.f32.mrf.mxu0
        %v1616 = vadd.f32 %v562, %v1615
        %v1617 = vpop.f32.mrf.mxu0
        %v1618 = vadd.f32 %v562, %v1617
        %1619 = vmatmul.bf16.gmra.mxu0 %v754
        %v1620 = vpop.f32.mrf.mxu0
        %v1621 = vadd.f32 %v562, %v1620
        %v1622 = vpop.f32.mrf.mxu0
        %v1623 = vadd.f32 %v562, %v1622
        %1624 = vdwg.mxu0
        %1625 = vmatpush.bf16.msra.mxu0 %v1333
        %1626 = vmatpush.bf16.msra.mxu0 %v1330
        %1627 = vmatpush.bf16.msra.mxu0 %v1327
        %1628 = vmatpush.bf16.msra.mxu0 %v1324
        %1629 = vmatpush.bf16.msra.mxu0 %v1321
        %1630 = vmatpush.bf16.msra.mxu0 %v1318
        %1631 = vmatpush.bf16.msra.mxu0 %v1315
        %1632 = vmatpush.bf16.msra.mxu0 %v1312
        %1633 = vmatmul.bf16.gmra.mxu0 %v713
        %v1634 = vpop.f32.mrf.mxu0
        %v1635 = vadd.f32 %v1586, %v1634
        %v1636 = vpop.f32.mrf.mxu0
        %v1637 = vadd.f32 %v1588, %v1636
        %1638 = vmatmul.bf16.gmra.mxu0 %v719
        %v1639 = vpop.f32.mrf.mxu0
        %v1640 = vadd.f32 %v1591, %v1639
        %v1641 = vpop.f32.mrf.mxu0
        %v1642 = vadd.f32 %v1593, %v1641
        %1643 = vmatmul.bf16.gmra.mxu0 %v725
        %v1644 = vpop.f32.mrf.mxu0
        %v1645 = vadd.f32 %v1596, %v1644
        %v1646 = vpop.f32.mrf.mxu0
        %v1647 = vadd.f32 %v1598, %v1646
        %1648 = vmatmul.bf16.gmra.mxu0 %v731
        %v1649 = vpop.f32.mrf.mxu0
        %v1650 = vadd.f32 %v1601, %v1649
        %v1651 = vpop.f32.mrf.mxu0
        %v1652 = vadd.f32 %v1603, %v1651
        %1653 = vmatmul.bf16.gmra.mxu0 %v737
        %v1654 = vpop.f32.mrf.mxu0
        %v1655 = vadd.f32 %v1606, %v1654
        %v1656 = vpop.f32.mrf.mxu0
        %v1657 = vadd.f32 %v1608, %v1656
        %1658 = vmatmul.bf16.gmra.mxu0 %v743
        %v1659 = vpop.f32.mrf.mxu0
        %v1660 = vadd.f32 %v1611, %v1659
        %v1661 = vpop.f32.mrf.mxu0
        %v1662 = vadd.f32 %v1613, %v1661
        %1663 = vmatmul.bf16.gmra.mxu0 %v749
        %v1664 = vpop.f32.mrf.mxu0
        %v1665 = vadd.f32 %v1616, %v1664
        %v1666 = vpop.f32.mrf.mxu0
        %v1667 = vadd.f32 %v1618, %v1666
        %1668 = vmatmul.bf16.gmra.mxu0 %v755
        %v1669 = vpop.f32.mrf.mxu0
        %v1670 = vadd.f32 %v1621, %v1669
        %v1671 = vpop.f32.mrf.mxu0
        %v1672 = vadd.f32 %v1623, %v1671
        %1673 = vdwg.mxu0
        %1674 = vmatpush.bf16.msra.mxu0 %v1357
        %1675 = vmatpush.bf16.msra.mxu0 %v1354
        %1676 = vmatpush.bf16.msra.mxu0 %v1351
        %1677 = vmatpush.bf16.msra.mxu0 %v1348
        %1678 = vmatpush.bf16.msra.mxu0 %v1345
        %1679 = vmatpush.bf16.msra.mxu0 %v1342
        %1680 = vmatpush.bf16.msra.mxu0 %v1339
        %1681 = vmatpush.bf16.msra.mxu0 %v1336
        %1682 = vmatmul.bf16.gmra.mxu0 %v714
        %v1683 = vpop.f32.mrf.mxu0
        %v1684 = vadd.f32 %v1635, %v1683
        %v1685 = vpop.f32.mrf.mxu0
        %v1686 = vadd.f32 %v1637, %v1685
        %1687 = vmatmul.bf16.gmra.mxu0 %v720
        %v1688 = vpop.f32.mrf.mxu0
        %v1689 = vadd.f32 %v1640, %v1688
        %v1690 = vpop.f32.mrf.mxu0
        %v1691 = vadd.f32 %v1642, %v1690
        %1692 = vmatmul.bf16.gmra.mxu0 %v726
        %v1693 = vpop.f32.mrf.mxu0
        %v1694 = vadd.f32 %v1645, %v1693
        %v1695 = vpop.f32.mrf.mxu0
        %v1696 = vadd.f32 %v1647, %v1695
        %1697 = vmatmul.bf16.gmra.mxu0 %v732
        %v1698 = vpop.f32.mrf.mxu0
        %v1699 = vadd.f32 %v1650, %v1698
        %v1700 = vpop.f32.mrf.mxu0
        %v1701 = vadd.f32 %v1652, %v1700
        %1702 = vmatmul.bf16.gmra.mxu0 %v738
        %v1703 = vpop.f32.mrf.mxu0
        %v1704 = vadd.f32 %v1655, %v1703
        %v1705 = vpop.f32.mrf.mxu0
        %v1706 = vadd.f32 %v1657, %v1705
        %1707 = vmatmul.bf16.gmra.mxu0 %v744
        %v1708 = vpop.f32.mrf.mxu0
        %v1709 = vadd.f32 %v1660, %v1708
        %v1710 = vpop.f32.mrf.mxu0
        %v1711 = vadd.f32 %v1662, %v1710
        %1712 = vmatmul.bf16.gmra.mxu0 %v750
        %v1713 = vpop.f32.mrf.mxu0
        %v1714 = vadd.f32 %v1665, %v1713
        %v1715 = vpop.f32.mrf.mxu0
        %v1716 = vadd.f32 %v1667, %v1715
        %1717 = vmatmul.bf16.gmra.mxu0 %v756
        %v1718 = vpop.f32.mrf.mxu0
        %v1719 = vadd.f32 %v1670, %v1718
        %v1720 = vpop.f32.mrf.mxu0
        %v1721 = vadd.f32 %v1672, %v1720
        %1722 = vdwg.mxu0
        %1723 = vmatpush.bf16.msra.mxu0 %v1381
        %1724 = vmatpush.bf16.msra.mxu0 %v1378
        %1725 = vmatpush.bf16.msra.mxu0 %v1375
        %1726 = vmatpush.bf16.msra.mxu0 %v1372
        %1727 = vmatpush.bf16.msra.mxu0 %v1369
        %1728 = vmatpush.bf16.msra.mxu0 %v1366
        %1729 = vmatpush.bf16.msra.mxu0 %v1363
        %1730 = vmatpush.bf16.msra.mxu0 %v1360
        %1731 = vmatmul.bf16.gmra.mxu0 %v715
        %v1732 = vpop.f32.mrf.mxu0
        %v1733 = vadd.f32 %v1684, %v1732
        %v1734 = vpop.f32.mrf.mxu0
        %v1735 = vadd.f32 %v1686, %v1734
        %1736 = vmatmul.bf16.gmra.mxu0 %v721
        %v1737 = vpop.f32.mrf.mxu0
        %v1738 = vadd.f32 %v1689, %v1737
        %v1739 = vpop.f32.mrf.mxu0
        %v1740 = vadd.f32 %v1691, %v1739
        %1741 = vmatmul.bf16.gmra.mxu0 %v727
        %v1742 = vpop.f32.mrf.mxu0
        %v1743 = vadd.f32 %v1694, %v1742
        %v1744 = vpop.f32.mrf.mxu0
        %v1745 = vadd.f32 %v1696, %v1744
        %1746 = vmatmul.bf16.gmra.mxu0 %v733
        %v1747 = vpop.f32.mrf.mxu0
        %v1748 = vadd.f32 %v1699, %v1747
        %v1749 = vpop.f32.mrf.mxu0
        %v1750 = vadd.f32 %v1701, %v1749
        %1751 = vmatmul.bf16.gmra.mxu0 %v739
        %v1752 = vpop.f32.mrf.mxu0
        %v1753 = vadd.f32 %v1704, %v1752
        %v1754 = vpop.f32.mrf.mxu0
        %v1755 = vadd.f32 %v1706, %v1754
        %1756 = vmatmul.bf16.gmra.mxu0 %v745
        %v1757 = vpop.f32.mrf.mxu0
        %v1758 = vadd.f32 %v1709, %v1757
        %v1759 = vpop.f32.mrf.mxu0
        %v1760 = vadd.f32 %v1711, %v1759
        %1761 = vmatmul.bf16.gmra.mxu0 %v751
        %v1762 = vpop.f32.mrf.mxu0
        %v1763 = vadd.f32 %v1714, %v1762
        %v1764 = vpop.f32.mrf.mxu0
        %v1765 = vadd.f32 %v1716, %v1764
        %1766 = vmatmul.bf16.gmra.mxu0 %v757
        %v1767 = vpop.f32.mrf.mxu0
        %v1768 = vadd.f32 %v1719, %v1767
        %v1769 = vpop.f32.mrf.mxu0
        %v1770 = vadd.f32 %v1721, %v1769
        %1771 = vdwg.mxu0
        %1772 = vmatpush.bf16.msra.mxu0 %v1405
        %1773 = vmatpush.bf16.msra.mxu0 %v1402
        %1774 = vmatpush.bf16.msra.mxu0 %v1399
        %1775 = vmatpush.bf16.msra.mxu0 %v1396
        %1776 = vmatpush.bf16.msra.mxu0 %v1393
        %1777 = vmatpush.bf16.msra.mxu0 %v1390
        %1778 = vmatpush.bf16.msra.mxu0 %v1387
        %1779 = vmatpush.bf16.msra.mxu0 %v1384
        %1780 = vmatmul.bf16.gmra.mxu0 %v716
        %v1781 = vpop.f32.mrf.mxu0
        %v1782 = vadd.f32 %v1733, %v1781
        %v1783 = vpop.f32.mrf.mxu0
        %v1784 = vadd.f32 %v1735, %v1783
        %1785 = vmatmul.bf16.gmra.mxu0 %v722
        %v1786 = vpop.f32.mrf.mxu0
        %v1787 = vadd.f32 %v1738, %v1786
        %v1788 = vpop.f32.mrf.mxu0
        %v1789 = vadd.f32 %v1740, %v1788
        %1790 = vmatmul.bf16.gmra.mxu0 %v728
        %v1791 = vpop.f32.mrf.mxu0
        %v1792 = vadd.f32 %v1743, %v1791
        %v1793 = vpop.f32.mrf.mxu0
        %v1794 = vadd.f32 %v1745, %v1793
        %1795 = vmatmul.bf16.gmra.mxu0 %v734
        %v1796 = vpop.f32.mrf.mxu0
        %v1797 = vadd.f32 %v1748, %v1796
        %v1798 = vpop.f32.mrf.mxu0
        %v1799 = vadd.f32 %v1750, %v1798
        %1800 = vmatmul.bf16.gmra.mxu0 %v740
        %v1801 = vpop.f32.mrf.mxu0
        %v1802 = vadd.f32 %v1753, %v1801
        %v1803 = vpop.f32.mrf.mxu0
        %v1804 = vadd.f32 %v1755, %v1803
        %1805 = vmatmul.bf16.gmra.mxu0 %v746
        %v1806 = vpop.f32.mrf.mxu0
        %v1807 = vadd.f32 %v1758, %v1806
        %v1808 = vpop.f32.mrf.mxu0
        %v1809 = vadd.f32 %v1760, %v1808
        %1810 = vmatmul.bf16.gmra.mxu0 %v752
        %v1811 = vpop.f32.mrf.mxu0
        %v1812 = vadd.f32 %v1763, %v1811
        %v1813 = vpop.f32.mrf.mxu0
        %v1814 = vadd.f32 %v1765, %v1813
        %1815 = vmatmul.bf16.gmra.mxu0 %v758
        %v1816 = vpop.f32.mrf.mxu0
        %v1817 = vadd.f32 %v1768, %v1816
        %v1818 = vpop.f32.mrf.mxu0
        %v1819 = vadd.f32 %v1770, %v1818
        %1820 = vdwg.mxu0
        %1821 = vmatpush.bf16.msra.mxu0 %v1429
        %1822 = vmatpush.bf16.msra.mxu0 %v1426
        %1823 = vmatpush.bf16.msra.mxu0 %v1423
        %1824 = vmatpush.bf16.msra.mxu0 %v1420
        %1825 = vmatpush.bf16.msra.mxu0 %v1417
        %1826 = vmatpush.bf16.msra.mxu0 %v1414
        %1827 = vmatpush.bf16.msra.mxu0 %v1411
        %1828 = vmatpush.bf16.msra.mxu0 %v1408
        %1829 = vmatmul.bf16.gmra.mxu0 %v717
        %v1830 = vpop.f32.mrf.mxu0
        %v1831 = vadd.f32 %v1782, %v1830
        %v1832 = vpop.f32.mrf.mxu0
        %v1833 = vadd.f32 %v1784, %v1832
        %1834 = vmatmul.bf16.gmra.mxu0 %v723
        %v1835 = vpop.f32.mrf.mxu0
        %v1836 = vadd.f32 %v1787, %v1835
        %v1837 = vpop.f32.mrf.mxu0
        %v1838 = vadd.f32 %v1789, %v1837
        %1839 = vmatmul.bf16.gmra.mxu0 %v729
        %v1840 = vpop.f32.mrf.mxu0
        %v1841 = vadd.f32 %v1792, %v1840
        %v1842 = vpop.f32.mrf.mxu0
        %v1843 = vadd.f32 %v1794, %v1842
        %1844 = vmatmul.bf16.gmra.mxu0 %v735
        %v1845 = vpop.f32.mrf.mxu0
        %v1846 = vadd.f32 %v1797, %v1845
        %v1847 = vpop.f32.mrf.mxu0
        %v1848 = vadd.f32 %v1799, %v1847
        %1849 = vmatmul.bf16.gmra.mxu0 %v741
        %v1850 = vpop.f32.mrf.mxu0
        %v1851 = vadd.f32 %v1802, %v1850
        %v1852 = vpop.f32.mrf.mxu0
        %v1853 = vadd.f32 %v1804, %v1852
        %1854 = vmatmul.bf16.gmra.mxu0 %v747
        %v1855 = vpop.f32.mrf.mxu0
        %v1856 = vadd.f32 %v1807, %v1855
        %v1857 = vpop.f32.mrf.mxu0
        %v1858 = vadd.f32 %v1809, %v1857
        %1859 = vmatmul.bf16.gmra.mxu0 %v753
        %v1860 = vpop.f32.mrf.mxu0
        %v1861 = vadd.f32 %v1812, %v1860
        %v1862 = vpop.f32.mrf.mxu0
        %v1863 = vadd.f32 %v1814, %v1862
        %1864 = vmatmul.bf16.gmra.mxu0 %v759
        %v1865 = vpop.f32.mrf.mxu0
        %v1866 = vadd.f32 %v1817, %v1865
        %v1867 = vpop.f32.mrf.mxu0
        %v1868 = vadd.f32 %v1819, %v1867
        %1869 = vdwg.mxu0
        %1870 = vmatpush.bf16.msra.mxu0 %v1310
        %1871 = vmatpush.bf16.msra.mxu0 %v1307
        %1872 = vmatpush.bf16.msra.mxu0 %v1304
        %1873 = vmatpush.bf16.msra.mxu0 %v1301
        %1874 = vmatpush.bf16.msra.mxu0 %v1298
        %1875 = vmatpush.bf16.msra.mxu0 %v1295
        %1876 = vmatpush.bf16.msra.mxu0 %v1292
        %1877 = vmatpush.bf16.msra.mxu0 %v1289
        %1878 = vmatmul.bf16.gmra.mxu0 %v712
        %v1879 = vpop.f32.mrf.mxu0
        %v1880 = vadd.f32 %v563, %v1879
        %v1881 = vpop.f32.mrf.mxu0
        %v1882 = vadd.f32 %v563, %v1881
        %1883 = vmatmul.bf16.gmra.mxu0 %v718
        %v1884 = vpop.f32.mrf.mxu0
        %v1885 = vadd.f32 %v563, %v1884
        %v1886 = vpop.f32.mrf.mxu0
        %v1887 = vadd.f32 %v563, %v1886
        %1888 = vmatmul.bf16.gmra.mxu0 %v724
        %v1889 = vpop.f32.mrf.mxu0
        %v1890 = vadd.f32 %v563, %v1889
        %v1891 = vpop.f32.mrf.mxu0
        %v1892 = vadd.f32 %v563, %v1891
        %1893 = vmatmul.bf16.gmra.mxu0 %v730
        %v1894 = vpop.f32.mrf.mxu0
        %v1895 = vadd.f32 %v563, %v1894
        %v1896 = vpop.f32.mrf.mxu0
        %v1897 = vadd.f32 %v563, %v1896
        %1898 = vmatmul.bf16.gmra.mxu0 %v736
        %v1899 = vpop.f32.mrf.mxu0
        %v1900 = vadd.f32 %v563, %v1899
        %v1901 = vpop.f32.mrf.mxu0
        %v1902 = vadd.f32 %v563, %v1901
        %1903 = vmatmul.bf16.gmra.mxu0 %v742
        %v1904 = vpop.f32.mrf.mxu0
        %v1905 = vadd.f32 %v563, %v1904
        %v1906 = vpop.f32.mrf.mxu0
        %v1907 = vadd.f32 %v563, %v1906
        %1908 = vmatmul.bf16.gmra.mxu0 %v748
        %v1909 = vpop.f32.mrf.mxu0
        %v1910 = vadd.f32 %v563, %v1909
        %v1911 = vpop.f32.mrf.mxu0
        %v1912 = vadd.f32 %v563, %v1911
        %1913 = vmatmul.bf16.gmra.mxu0 %v754
        %v1914 = vpop.f32.mrf.mxu0
        %v1915 = vadd.f32 %v563, %v1914
        %v1916 = vpop.f32.mrf.mxu0
        %v1917 = vadd.f32 %v563, %v1916
        %1918 = vdwg.mxu0
        %1919 = vmatpush.bf16.msra.mxu0 %v1334
        %1920 = vmatpush.bf16.msra.mxu0 %v1331
        %1921 = vmatpush.bf16.msra.mxu0 %v1328
        %1922 = vmatpush.bf16.msra.mxu0 %v1325
        %1923 = vmatpush.bf16.msra.mxu0 %v1322
        %1924 = vmatpush.bf16.msra.mxu0 %v1319
        %1925 = vmatpush.bf16.msra.mxu0 %v1316
        %1926 = vmatpush.bf16.msra.mxu0 %v1313
        %1927 = vmatmul.bf16.gmra.mxu0 %v713
        %v1928 = vpop.f32.mrf.mxu0
        %v1929 = vadd.f32 %v1880, %v1928
        %v1930 = vpop.f32.mrf.mxu0
        %v1931 = vadd.f32 %v1882, %v1930
        %1932 = vmatmul.bf16.gmra.mxu0 %v719
        %v1933 = vpop.f32.mrf.mxu0
        %v1934 = vadd.f32 %v1885, %v1933
        %v1935 = vpop.f32.mrf.mxu0
        %v1936 = vadd.f32 %v1887, %v1935
        %1937 = vmatmul.bf16.gmra.mxu0 %v725
        %v1938 = vpop.f32.mrf.mxu0
        %v1939 = vadd.f32 %v1890, %v1938
        %v1940 = vpop.f32.mrf.mxu0
        %v1941 = vadd.f32 %v1892, %v1940
        %1942 = vmatmul.bf16.gmra.mxu0 %v731
        %v1943 = vpop.f32.mrf.mxu0
        %v1944 = vadd.f32 %v1895, %v1943
        %v1945 = vpop.f32.mrf.mxu0
        %v1946 = vadd.f32 %v1897, %v1945
        %1947 = vmatmul.bf16.gmra.mxu0 %v737
        %v1948 = vpop.f32.mrf.mxu0
        %v1949 = vadd.f32 %v1900, %v1948
        %v1950 = vpop.f32.mrf.mxu0
        %v1951 = vadd.f32 %v1902, %v1950
        %1952 = vmatmul.bf16.gmra.mxu0 %v743
        %v1953 = vpop.f32.mrf.mxu0
        %v1954 = vadd.f32 %v1905, %v1953
        %v1955 = vpop.f32.mrf.mxu0
        %v1956 = vadd.f32 %v1907, %v1955
        %1957 = vmatmul.bf16.gmra.mxu0 %v749
        %v1958 = vpop.f32.mrf.mxu0
        %v1959 = vadd.f32 %v1910, %v1958
        %v1960 = vpop.f32.mrf.mxu0
        %v1961 = vadd.f32 %v1912, %v1960
        %1962 = vmatmul.bf16.gmra.mxu0 %v755
        %v1963 = vpop.f32.mrf.mxu0
        %v1964 = vadd.f32 %v1915, %v1963
        %v1965 = vpop.f32.mrf.mxu0
        %v1966 = vadd.f32 %v1917, %v1965
        %1967 = vdwg.mxu0
        %1968 = vmatpush.bf16.msra.mxu0 %v1358
        %1969 = vmatpush.bf16.msra.mxu0 %v1355
        %1970 = vmatpush.bf16.msra.mxu0 %v1352
        %1971 = vmatpush.bf16.msra.mxu0 %v1349
        %1972 = vmatpush.bf16.msra.mxu0 %v1346
        %1973 = vmatpush.bf16.msra.mxu0 %v1343
        %1974 = vmatpush.bf16.msra.mxu0 %v1340
        %1975 = vmatpush.bf16.msra.mxu0 %v1337
        %1976 = vmatmul.bf16.gmra.mxu0 %v714
        %v1977 = vpop.f32.mrf.mxu0
        %v1978 = vadd.f32 %v1929, %v1977
        %v1979 = vpop.f32.mrf.mxu0
        %v1980 = vadd.f32 %v1931, %v1979
        %1981 = vmatmul.bf16.gmra.mxu0 %v720
        %v1982 = vpop.f32.mrf.mxu0
        %v1983 = vadd.f32 %v1934, %v1982
        %v1984 = vpop.f32.mrf.mxu0
        %v1985 = vadd.f32 %v1936, %v1984
        %1986 = vmatmul.bf16.gmra.mxu0 %v726
        %v1987 = vpop.f32.mrf.mxu0
        %v1988 = vadd.f32 %v1939, %v1987
        %v1989 = vpop.f32.mrf.mxu0
        %v1990 = vadd.f32 %v1941, %v1989
        %1991 = vmatmul.bf16.gmra.mxu0 %v732
        %v1992 = vpop.f32.mrf.mxu0
        %v1993 = vadd.f32 %v1944, %v1992
        %v1994 = vpop.f32.mrf.mxu0
        %v1995 = vadd.f32 %v1946, %v1994
        %1996 = vmatmul.bf16.gmra.mxu0 %v738
        %v1997 = vpop.f32.mrf.mxu0
        %v1998 = vadd.f32 %v1949, %v1997
        %v1999 = vpop.f32.mrf.mxu0
        %v2000 = vadd.f32 %v1951, %v1999
        %2001 = vmatmul.bf16.gmra.mxu0 %v744
        %v2002 = vpop.f32.mrf.mxu0
        %v2003 = vadd.f32 %v1954, %v2002
        %v2004 = vpop.f32.mrf.mxu0
        %v2005 = vadd.f32 %v1956, %v2004
        %2006 = vmatmul.bf16.gmra.mxu0 %v750
        %v2007 = vpop.f32.mrf.mxu0
        %v2008 = vadd.f32 %v1959, %v2007
        %v2009 = vpop.f32.mrf.mxu0
        %v2010 = vadd.f32 %v1961, %v2009
        %2011 = vmatmul.bf16.gmra.mxu0 %v756
        %v2012 = vpop.f32.mrf.mxu0
        %v2013 = vadd.f32 %v1964, %v2012
        %v2014 = vpop.f32.mrf.mxu0
        %v2015 = vadd.f32 %v1966, %v2014
        %2016 = vdwg.mxu0
        %2017 = vmatpush.bf16.msra.mxu0 %v1382
        %2018 = vmatpush.bf16.msra.mxu0 %v1379
        %2019 = vmatpush.bf16.msra.mxu0 %v1376
        %2020 = vmatpush.bf16.msra.mxu0 %v1373
        %2021 = vmatpush.bf16.msra.mxu0 %v1370
        %2022 = vmatpush.bf16.msra.mxu0 %v1367
        %2023 = vmatpush.bf16.msra.mxu0 %v1364
        %2024 = vmatpush.bf16.msra.mxu0 %v1361
        %2025 = vmatmul.bf16.gmra.mxu0 %v715
        %v2026 = vpop.f32.mrf.mxu0
        %v2027 = vadd.f32 %v1978, %v2026
        %v2028 = vpop.f32.mrf.mxu0
        %v2029 = vadd.f32 %v1980, %v2028
        %2030 = vmatmul.bf16.gmra.mxu0 %v721
        %v2031 = vpop.f32.mrf.mxu0
        %v2032 = vadd.f32 %v1983, %v2031
        %v2033 = vpop.f32.mrf.mxu0
        %v2034 = vadd.f32 %v1985, %v2033
        %2035 = vmatmul.bf16.gmra.mxu0 %v727
        %v2036 = vpop.f32.mrf.mxu0
        %v2037 = vadd.f32 %v1988, %v2036
        %v2038 = vpop.f32.mrf.mxu0
        %v2039 = vadd.f32 %v1990, %v2038
        %2040 = vmatmul.bf16.gmra.mxu0 %v733
        %v2041 = vpop.f32.mrf.mxu0
        %v2042 = vadd.f32 %v1993, %v2041
        %v2043 = vpop.f32.mrf.mxu0
        %v2044 = vadd.f32 %v1995, %v2043
        %2045 = vmatmul.bf16.gmra.mxu0 %v739
        %v2046 = vpop.f32.mrf.mxu0
        %v2047 = vadd.f32 %v1998, %v2046
        %v2048 = vpop.f32.mrf.mxu0
        %v2049 = vadd.f32 %v2000, %v2048
        %2050 = vmatmul.bf16.gmra.mxu0 %v745
        %v2051 = vpop.f32.mrf.mxu0
        %v2052 = vadd.f32 %v2003, %v2051
        %v2053 = vpop.f32.mrf.mxu0
        %v2054 = vadd.f32 %v2005, %v2053
        %2055 = vmatmul.bf16.gmra.mxu0 %v751
        %v2056 = vpop.f32.mrf.mxu0
        %v2057 = vadd.f32 %v2008, %v2056
        %v2058 = vpop.f32.mrf.mxu0
        %v2059 = vadd.f32 %v2010, %v2058
        %2060 = vmatmul.bf16.gmra.mxu0 %v757
        %v2061 = vpop.f32.mrf.mxu0
        %v2062 = vadd.f32 %v2013, %v2061
        %v2063 = vpop.f32.mrf.mxu0
        %v2064 = vadd.f32 %v2015, %v2063
        %2065 = vdwg.mxu0
        %2066 = vmatpush.bf16.msra.mxu0 %v1406
        %2067 = vmatpush.bf16.msra.mxu0 %v1403
        %2068 = vmatpush.bf16.msra.mxu0 %v1400
        %2069 = vmatpush.bf16.msra.mxu0 %v1397
        %2070 = vmatpush.bf16.msra.mxu0 %v1394
        %2071 = vmatpush.bf16.msra.mxu0 %v1391
        %2072 = vmatpush.bf16.msra.mxu0 %v1388
        %2073 = vmatpush.bf16.msra.mxu0 %v1385
        %2074 = vmatmul.bf16.gmra.mxu0 %v716
        %v2075 = vpop.f32.mrf.mxu0
        %v2076 = vadd.f32 %v2027, %v2075
        %v2077 = vpop.f32.mrf.mxu0
        %v2078 = vadd.f32 %v2029, %v2077
        %2079 = vmatmul.bf16.gmra.mxu0 %v722
        %v2080 = vpop.f32.mrf.mxu0
        %v2081 = vadd.f32 %v2032, %v2080
        %v2082 = vpop.f32.mrf.mxu0
        %v2083 = vadd.f32 %v2034, %v2082
        %2084 = vmatmul.bf16.gmra.mxu0 %v728
        %v2085 = vpop.f32.mrf.mxu0
        %v2086 = vadd.f32 %v2037, %v2085
        %v2087 = vpop.f32.mrf.mxu0
        %v2088 = vadd.f32 %v2039, %v2087
        %2089 = vmatmul.bf16.gmra.mxu0 %v734
        %v2090 = vpop.f32.mrf.mxu0
        %v2091 = vadd.f32 %v2042, %v2090
        %v2092 = vpop.f32.mrf.mxu0
        %v2093 = vadd.f32 %v2044, %v2092
        %2094 = vmatmul.bf16.gmra.mxu0 %v740
        %v2095 = vpop.f32.mrf.mxu0
        %v2096 = vadd.f32 %v2047, %v2095
        %v2097 = vpop.f32.mrf.mxu0
        %v2098 = vadd.f32 %v2049, %v2097
        %2099 = vmatmul.bf16.gmra.mxu0 %v746
        %v2100 = vpop.f32.mrf.mxu0
        %v2101 = vadd.f32 %v2052, %v2100
        %v2102 = vpop.f32.mrf.mxu0
        %v2103 = vadd.f32 %v2054, %v2102
        %2104 = vmatmul.bf16.gmra.mxu0 %v752
        %v2105 = vpop.f32.mrf.mxu0
        %v2106 = vadd.f32 %v2057, %v2105
        %v2107 = vpop.f32.mrf.mxu0
        %v2108 = vadd.f32 %v2059, %v2107
        %2109 = vmatmul.bf16.gmra.mxu0 %v758
        %v2110 = vpop.f32.mrf.mxu0
        %v2111 = vadd.f32 %v2062, %v2110
        %v2112 = vpop.f32.mrf.mxu0
        %v2113 = vadd.f32 %v2064, %v2112
        %2114 = vdwg.mxu0
        %2115 = vmatpush.bf16.msra.mxu0 %v1430
        %2116 = vmatpush.bf16.msra.mxu0 %v1427
        %2117 = vmatpush.bf16.msra.mxu0 %v1424
        %2118 = vmatpush.bf16.msra.mxu0 %v1421
        %2119 = vmatpush.bf16.msra.mxu0 %v1418
        %2120 = vmatpush.bf16.msra.mxu0 %v1415
        %2121 = vmatpush.bf16.msra.mxu0 %v1412
        %2122 = vmatpush.bf16.msra.mxu0 %v1409
        %2123 = vmatmul.bf16.gmra.mxu0 %v717
        %v2124 = vpop.f32.mrf.mxu0
        %v2125 = vadd.f32 %v2076, %v2124
        %v2126 = vpop.f32.mrf.mxu0
        %v2127 = vadd.f32 %v2078, %v2126
        %2128 = vmatmul.bf16.gmra.mxu0 %v723
        %v2129 = vpop.f32.mrf.mxu0
        %v2130 = vadd.f32 %v2081, %v2129
        %v2131 = vpop.f32.mrf.mxu0
        %v2132 = vadd.f32 %v2083, %v2131
        %2133 = vmatmul.bf16.gmra.mxu0 %v729
        %v2134 = vpop.f32.mrf.mxu0
        %v2135 = vadd.f32 %v2086, %v2134
        %v2136 = vpop.f32.mrf.mxu0
        %v2137 = vadd.f32 %v2088, %v2136
        %2138 = vmatmul.bf16.gmra.mxu0 %v735
        %v2139 = vpop.f32.mrf.mxu0
        %v2140 = vadd.f32 %v2091, %v2139
        %v2141 = vpop.f32.mrf.mxu0
        %v2142 = vadd.f32 %v2093, %v2141
        %2143 = vmatmul.bf16.gmra.mxu0 %v741
        %v2144 = vpop.f32.mrf.mxu0
        %v2145 = vadd.f32 %v2096, %v2144
        %v2146 = vpop.f32.mrf.mxu0
        %v2147 = vadd.f32 %v2098, %v2146
        %2148 = vmatmul.bf16.gmra.mxu0 %v747
        %v2149 = vpop.f32.mrf.mxu0
        %v2150 = vadd.f32 %v2101, %v2149
        %v2151 = vpop.f32.mrf.mxu0
        %v2152 = vadd.f32 %v2103, %v2151
        %2153 = vmatmul.bf16.gmra.mxu0 %v753
        %v2154 = vpop.f32.mrf.mxu0
        %v2155 = vadd.f32 %v2106, %v2154
        %v2156 = vpop.f32.mrf.mxu0
        %v2157 = vadd.f32 %v2108, %v2156
        %2158 = vmatmul.bf16.gmra.mxu0 %v759
        %v2159 = vpop.f32.mrf.mxu0
        %v2160 = vadd.f32 %v2111, %v2159
        %v2161 = vpop.f32.mrf.mxu0
        %v2162 = vadd.f32 %v2113, %v2161
        %2163 = vdwg.mxu0
        %2164 = vmatpush.bf16.msra.mxu0 %v1311
        %2165 = vmatpush.bf16.msra.mxu0 %v1308
        %2166 = vmatpush.bf16.msra.mxu0 %v1305
        %2167 = vmatpush.bf16.msra.mxu0 %v1302
        %2168 = vmatpush.bf16.msra.mxu0 %v1299
        %2169 = vmatpush.bf16.msra.mxu0 %v1296
        %2170 = vmatpush.bf16.msra.mxu0 %v1293
        %2171 = vmatpush.bf16.msra.mxu0 %v1290
        %2172 = vmatmul.bf16.gmra.mxu0 %v712
        %v2173 = vpop.f32.mrf.mxu0
        %v2174 = vadd.f32 %v564, %v2173
        %v2175 = vpop.f32.mrf.mxu0
        %v2176 = vadd.f32 %v564, %v2175
        %2177 = vmatmul.bf16.gmra.mxu0 %v718
        %v2178 = vpop.f32.mrf.mxu0
        %v2179 = vadd.f32 %v564, %v2178
        %v2180 = vpop.f32.mrf.mxu0
        %v2181 = vadd.f32 %v564, %v2180
        %2182 = vmatmul.bf16.gmra.mxu0 %v724
        %v2183 = vpop.f32.mrf.mxu0
        %v2184 = vadd.f32 %v564, %v2183
        %v2185 = vpop.f32.mrf.mxu0
        %v2186 = vadd.f32 %v564, %v2185
        %2187 = vmatmul.bf16.gmra.mxu0 %v730
        %v2188 = vpop.f32.mrf.mxu0
        %v2189 = vadd.f32 %v564, %v2188
        %v2190 = vpop.f32.mrf.mxu0
        %v2191 = vadd.f32 %v564, %v2190
        %2192 = vmatmul.bf16.gmra.mxu0 %v736
        %v2193 = vpop.f32.mrf.mxu0
        %v2194 = vadd.f32 %v564, %v2193
        %v2195 = vpop.f32.mrf.mxu0
        %v2196 = vadd.f32 %v564, %v2195
        %2197 = vmatmul.bf16.gmra.mxu0 %v742
        %v2198 = vpop.f32.mrf.mxu0
        %v2199 = vadd.f32 %v564, %v2198
        %v2200 = vpop.f32.mrf.mxu0
        %v2201 = vadd.f32 %v564, %v2200
        %2202 = vmatmul.bf16.gmra.mxu0 %v748
        %v2203 = vpop.f32.mrf.mxu0
        %v2204 = vadd.f32 %v564, %v2203
        %v2205 = vpop.f32.mrf.mxu0
        %v2206 = vadd.f32 %v564, %v2205
        %2207 = vmatmul.bf16.gmra.mxu0 %v754
        %v2208 = vpop.f32.mrf.mxu0
        %v2209 = vadd.f32 %v564, %v2208
        %v2210 = vpop.f32.mrf.mxu0
        %v2211 = vadd.f32 %v564, %v2210
        %2212 = vdwg.mxu0
        %2213 = vmatpush.bf16.msra.mxu0 %v1335
        %2214 = vmatpush.bf16.msra.mxu0 %v1332
        %2215 = vmatpush.bf16.msra.mxu0 %v1329
        %2216 = vmatpush.bf16.msra.mxu0 %v1326
        %2217 = vmatpush.bf16.msra.mxu0 %v1323
        %2218 = vmatpush.bf16.msra.mxu0 %v1320
        %2219 = vmatpush.bf16.msra.mxu0 %v1317
        %2220 = vmatpush.bf16.msra.mxu0 %v1314
        %2221 = vmatmul.bf16.gmra.mxu0 %v713
        %v2222 = vpop.f32.mrf.mxu0
        %v2223 = vadd.f32 %v2174, %v2222
        %v2224 = vpop.f32.mrf.mxu0
        %v2225 = vadd.f32 %v2176, %v2224
        %2226 = vmatmul.bf16.gmra.mxu0 %v719
        %v2227 = vpop.f32.mrf.mxu0
        %v2228 = vadd.f32 %v2179, %v2227
        %v2229 = vpop.f32.mrf.mxu0
        %v2230 = vadd.f32 %v2181, %v2229
        %2231 = vmatmul.bf16.gmra.mxu0 %v725
        %v2232 = vpop.f32.mrf.mxu0
        %v2233 = vadd.f32 %v2184, %v2232
        %v2234 = vpop.f32.mrf.mxu0
        %v2235 = vadd.f32 %v2186, %v2234
        %2236 = vmatmul.bf16.gmra.mxu0 %v731
        %v2237 = vpop.f32.mrf.mxu0
        %v2238 = vadd.f32 %v2189, %v2237
        %v2239 = vpop.f32.mrf.mxu0
        %v2240 = vadd.f32 %v2191, %v2239
        %2241 = vmatmul.bf16.gmra.mxu0 %v737
        %v2242 = vpop.f32.mrf.mxu0
        %v2243 = vadd.f32 %v2194, %v2242
        %v2244 = vpop.f32.mrf.mxu0
        %v2245 = vadd.f32 %v2196, %v2244
        %2246 = vmatmul.bf16.gmra.mxu0 %v743
        %v2247 = vpop.f32.mrf.mxu0
        %v2248 = vadd.f32 %v2199, %v2247
        %v2249 = vpop.f32.mrf.mxu0
        %v2250 = vadd.f32 %v2201, %v2249
        %2251 = vmatmul.bf16.gmra.mxu0 %v749
        %v2252 = vpop.f32.mrf.mxu0
        %v2253 = vadd.f32 %v2204, %v2252
        %v2254 = vpop.f32.mrf.mxu0
        %v2255 = vadd.f32 %v2206, %v2254
        %2256 = vmatmul.bf16.gmra.mxu0 %v755
        %v2257 = vpop.f32.mrf.mxu0
        %v2258 = vadd.f32 %v2209, %v2257
        %v2259 = vpop.f32.mrf.mxu0
        %v2260 = vadd.f32 %v2211, %v2259
        %2261 = vdwg.mxu0
        %2262 = vmatpush.bf16.msra.mxu0 %v1359
        %2263 = vmatpush.bf16.msra.mxu0 %v1356
        %2264 = vmatpush.bf16.msra.mxu0 %v1353
        %2265 = vmatpush.bf16.msra.mxu0 %v1350
        %2266 = vmatpush.bf16.msra.mxu0 %v1347
        %2267 = vmatpush.bf16.msra.mxu0 %v1344
        %2268 = vmatpush.bf16.msra.mxu0 %v1341
        %2269 = vmatpush.bf16.msra.mxu0 %v1338
        %2270 = vmatmul.bf16.gmra.mxu0 %v714
        %v2271 = vpop.f32.mrf.mxu0
        %v2272 = vadd.f32 %v2223, %v2271
        %v2273 = vpop.f32.mrf.mxu0
        %v2274 = vadd.f32 %v2225, %v2273
        %2275 = vmatmul.bf16.gmra.mxu0 %v720
        %v2276 = vpop.f32.mrf.mxu0
        %v2277 = vadd.f32 %v2228, %v2276
        %v2278 = vpop.f32.mrf.mxu0
        %v2279 = vadd.f32 %v2230, %v2278
        %2280 = vmatmul.bf16.gmra.mxu0 %v726
        %v2281 = vpop.f32.mrf.mxu0
        %v2282 = vadd.f32 %v2233, %v2281
        %v2283 = vpop.f32.mrf.mxu0
        %v2284 = vadd.f32 %v2235, %v2283
        %2285 = vmatmul.bf16.gmra.mxu0 %v732
        %v2286 = vpop.f32.mrf.mxu0
        %v2287 = vadd.f32 %v2238, %v2286
        %v2288 = vpop.f32.mrf.mxu0
        %v2289 = vadd.f32 %v2240, %v2288
        %2290 = vmatmul.bf16.gmra.mxu0 %v738
        %v2291 = vpop.f32.mrf.mxu0
        %v2292 = vadd.f32 %v2243, %v2291
        %v2293 = vpop.f32.mrf.mxu0
        %v2294 = vadd.f32 %v2245, %v2293
        %2295 = vmatmul.bf16.gmra.mxu0 %v744
        %v2296 = vpop.f32.mrf.mxu0
        %v2297 = vadd.f32 %v2248, %v2296
        %v2298 = vpop.f32.mrf.mxu0
        %v2299 = vadd.f32 %v2250, %v2298
        %2300 = vmatmul.bf16.gmra.mxu0 %v750
        %v2301 = vpop.f32.mrf.mxu0
        %v2302 = vadd.f32 %v2253, %v2301
        %v2303 = vpop.f32.mrf.mxu0
        %v2304 = vadd.f32 %v2255, %v2303
        %2305 = vmatmul.bf16.gmra.mxu0 %v756
        %v2306 = vpop.f32.mrf.mxu0
        %v2307 = vadd.f32 %v2258, %v2306
        %v2308 = vpop.f32.mrf.mxu0
        %v2309 = vadd.f32 %v2260, %v2308
        %2310 = vdwg.mxu0
        %2311 = vmatpush.bf16.msra.mxu0 %v1383
        %2312 = vmatpush.bf16.msra.mxu0 %v1380
        %2313 = vmatpush.bf16.msra.mxu0 %v1377
        %2314 = vmatpush.bf16.msra.mxu0 %v1374
        %2315 = vmatpush.bf16.msra.mxu0 %v1371
        %2316 = vmatpush.bf16.msra.mxu0 %v1368
        %2317 = vmatpush.bf16.msra.mxu0 %v1365
        %2318 = vmatpush.bf16.msra.mxu0 %v1362
        %2319 = vmatmul.bf16.gmra.mxu0 %v715
        %v2320 = vpop.f32.mrf.mxu0
        %v2321 = vadd.f32 %v2272, %v2320
        %v2322 = vpop.f32.mrf.mxu0
        %v2323 = vadd.f32 %v2274, %v2322
        %2324 = vmatmul.bf16.gmra.mxu0 %v721
        %v2325 = vpop.f32.mrf.mxu0
        %v2326 = vadd.f32 %v2277, %v2325
        %v2327 = vpop.f32.mrf.mxu0
        %v2328 = vadd.f32 %v2279, %v2327
        %2329 = vmatmul.bf16.gmra.mxu0 %v727
        %v2330 = vpop.f32.mrf.mxu0
        %v2331 = vadd.f32 %v2282, %v2330
        %v2332 = vpop.f32.mrf.mxu0
        %v2333 = vadd.f32 %v2284, %v2332
        %2334 = vmatmul.bf16.gmra.mxu0 %v733
        %v2335 = vpop.f32.mrf.mxu0
        %v2336 = vadd.f32 %v2287, %v2335
        %v2337 = vpop.f32.mrf.mxu0
        %v2338 = vadd.f32 %v2289, %v2337
        %2339 = vmatmul.bf16.gmra.mxu0 %v739
        %v2340 = vpop.f32.mrf.mxu0
        %v2341 = vadd.f32 %v2292, %v2340
        %v2342 = vpop.f32.mrf.mxu0
        %v2343 = vadd.f32 %v2294, %v2342
        %2344 = vmatmul.bf16.gmra.mxu0 %v745
        %v2345 = vpop.f32.mrf.mxu0
        %v2346 = vadd.f32 %v2297, %v2345
        %v2347 = vpop.f32.mrf.mxu0
        %v2348 = vadd.f32 %v2299, %v2347
        %2349 = vmatmul.bf16.gmra.mxu0 %v751
        %v2350 = vpop.f32.mrf.mxu0
        %v2351 = vadd.f32 %v2302, %v2350
        %v2352 = vpop.f32.mrf.mxu0
        %v2353 = vadd.f32 %v2304, %v2352
        %2354 = vmatmul.bf16.gmra.mxu0 %v757
        %v2355 = vpop.f32.mrf.mxu0
        %v2356 = vadd.f32 %v2307, %v2355
        %v2357 = vpop.f32.mrf.mxu0
        %v2358 = vadd.f32 %v2309, %v2357
        %2359 = vdwg.mxu0
        %2360 = vmatpush.bf16.msra.mxu0 %v1407
        %2361 = vmatpush.bf16.msra.mxu0 %v1404
        %2362 = vmatpush.bf16.msra.mxu0 %v1401
        %2363 = vmatpush.bf16.msra.mxu0 %v1398
        %2364 = vmatpush.bf16.msra.mxu0 %v1395
        %2365 = vmatpush.bf16.msra.mxu0 %v1392
        %2366 = vmatpush.bf16.msra.mxu0 %v1389
        %2367 = vmatpush.bf16.msra.mxu0 %v1386
        %2368 = vmatmul.bf16.gmra.mxu0 %v716
        %v2369 = vpop.f32.mrf.mxu0
        %v2370 = vadd.f32 %v2321, %v2369
        %v2371 = vpop.f32.mrf.mxu0
        %v2372 = vadd.f32 %v2323, %v2371
        %2373 = vmatmul.bf16.gmra.mxu0 %v722
        %v2374 = vpop.f32.mrf.mxu0
        %v2375 = vadd.f32 %v2326, %v2374
        %v2376 = vpop.f32.mrf.mxu0
        %v2377 = vadd.f32 %v2328, %v2376
        %2378 = vmatmul.bf16.gmra.mxu0 %v728
        %v2379 = vpop.f32.mrf.mxu0
        %v2380 = vadd.f32 %v2331, %v2379
        %v2381 = vpop.f32.mrf.mxu0
        %v2382 = vadd.f32 %v2333, %v2381
        %2383 = vmatmul.bf16.gmra.mxu0 %v734
        %v2384 = vpop.f32.mrf.mxu0
        %v2385 = vadd.f32 %v2336, %v2384
        %v2386 = vpop.f32.mrf.mxu0
        %v2387 = vadd.f32 %v2338, %v2386
        %2388 = vmatmul.bf16.gmra.mxu0 %v740
        %v2389 = vpop.f32.mrf.mxu0
        %v2390 = vadd.f32 %v2341, %v2389
        %v2391 = vpop.f32.mrf.mxu0
        %v2392 = vadd.f32 %v2343, %v2391
        %2393 = vmatmul.bf16.gmra.mxu0 %v746
        %v2394 = vpop.f32.mrf.mxu0
        %v2395 = vadd.f32 %v2346, %v2394
        %v2396 = vpop.f32.mrf.mxu0
        %v2397 = vadd.f32 %v2348, %v2396
        %2398 = vmatmul.bf16.gmra.mxu0 %v752
        %v2399 = vpop.f32.mrf.mxu0
        %v2400 = vadd.f32 %v2351, %v2399
        %v2401 = vpop.f32.mrf.mxu0
        %v2402 = vadd.f32 %v2353, %v2401
        %2403 = vmatmul.bf16.gmra.mxu0 %v758
        %v2404 = vpop.f32.mrf.mxu0
        %v2405 = vadd.f32 %v2356, %v2404
        %v2406 = vpop.f32.mrf.mxu0
        %v2407 = vadd.f32 %v2358, %v2406
        %2408 = vdwg.mxu0
        %2409 = vmatpush.bf16.msra.mxu0 %v1431
        %2410 = vmatpush.bf16.msra.mxu0 %v1428
        %2411 = vmatpush.bf16.msra.mxu0 %v1425
        %2412 = vmatpush.bf16.msra.mxu0 %v1422
        %2413 = vmatpush.bf16.msra.mxu0 %v1419
        %2414 = vmatpush.bf16.msra.mxu0 %v1416
        %2415 = vmatpush.bf16.msra.mxu0 %v1413
        %2416 = vmatpush.bf16.msra.mxu0 %v1410
        %2417 = vmatmul.bf16.gmra.mxu0 %v717
        %v2418 = vpop.f32.mrf.mxu0
        %v2419 = vadd.f32 %v2370, %v2418
        %v2420 = vpop.f32.mrf.mxu0
        %v2421 = vadd.f32 %v2372, %v2420
        %2422 = vmatmul.bf16.gmra.mxu0 %v723
        %v2423 = vpop.f32.mrf.mxu0
        %v2424 = vadd.f32 %v2375, %v2423
        %v2425 = vpop.f32.mrf.mxu0
        %v2426 = vadd.f32 %v2377, %v2425
        %2427 = vmatmul.bf16.gmra.mxu0 %v729
        %v2428 = vpop.f32.mrf.mxu0
        %v2429 = vadd.f32 %v2380, %v2428
        %v2430 = vpop.f32.mrf.mxu0
        %v2431 = vadd.f32 %v2382, %v2430
        %2432 = vmatmul.bf16.gmra.mxu0 %v735
        %v2433 = vpop.f32.mrf.mxu0
        %v2434 = vadd.f32 %v2385, %v2433
        %v2435 = vpop.f32.mrf.mxu0
        %v2436 = vadd.f32 %v2387, %v2435
        %2437 = vmatmul.bf16.gmra.mxu0 %v741
        %v2438 = vpop.f32.mrf.mxu0
        %v2439 = vadd.f32 %v2390, %v2438
        %v2440 = vpop.f32.mrf.mxu0
        %v2441 = vadd.f32 %v2392, %v2440
        %2442 = vmatmul.bf16.gmra.mxu0 %v747
        %v2443 = vpop.f32.mrf.mxu0
        %v2444 = vadd.f32 %v2395, %v2443
        %v2445 = vpop.f32.mrf.mxu0
        %v2446 = vadd.f32 %v2397, %v2445
        %2447 = vmatmul.bf16.gmra.mxu0 %v753
        %v2448 = vpop.f32.mrf.mxu0
        %v2449 = vadd.f32 %v2400, %v2448
        %v2450 = vpop.f32.mrf.mxu0
        %v2451 = vadd.f32 %v2402, %v2450
        %2452 = vmatmul.bf16.gmra.mxu0 %v759
        %v2453 = vpop.f32.mrf.mxu0
        %v2454 = vadd.f32 %v2405, %v2453
        %v2455 = vpop.f32.mrf.mxu0
        %v2456 = vadd.f32 %v2407, %v2455
        %2457 = vdwg.mxu0
        %v2458 = vpack.c.bf16 %v1833, %v1831
        %v2459 = vpack.c.bf16 %v2127, %v2125
        %v2460 = vpack.c.bf16 %v2421, %v2419
        %v2461 = vpack.c.bf16 %v1838, %v1836
        %v2462 = vpack.c.bf16 %v2132, %v2130
        %v2463 = vpack.c.bf16 %v2426, %v2424
        %v2464 = vpack.c.bf16 %v1843, %v1841
        %v2465 = vpack.c.bf16 %v2137, %v2135
        %v2466 = vpack.c.bf16 %v2431, %v2429
        %v2467 = vpack.c.bf16 %v1848, %v1846
        %v2468 = vpack.c.bf16 %v2142, %v2140
        %v2469 = vpack.c.bf16 %v2436, %v2434
        %v2470 = vpack.c.bf16 %v1853, %v1851
        %v2471 = vpack.c.bf16 %v2147, %v2145
        %v2472 = vpack.c.bf16 %v2441, %v2439
        %v2473 = vpack.c.bf16 %v1858, %v1856
        %v2474 = vpack.c.bf16 %v2152, %v2150
        %v2475 = vpack.c.bf16 %v2446, %v2444
        %v2476 = vpack.c.bf16 %v1863, %v1861
        %v2477 = vpack.c.bf16 %v2157, %v2155
        %v2478 = vpack.c.bf16 %v2451, %v2449
        %v2479 = vpack.c.bf16 %v1868, %v1866
        %v2480 = vpack.c.bf16 %v2162, %v2160
        %v2481 = vpack.c.bf16 %v2456, %v2454
        %v2482 = vld [vmem:[%s3] sm:$0xff]
        %v2483 = vld [vmem:[%s3 + $0x8] sm:$0xff]
        %v2484 = vld [vmem:[%s3 + $0x10] sm:$0xff]
        %v2485 = vld [vmem:[%s3 + $0x18] sm:$0xff]
        %v2486 = vld [vmem:[%s3 + $0x20] sm:$0xff]
        %v2487 = vld [vmem:[%s3 + $0x28] sm:$0xff]
        %v2488 = vld [vmem:[%s3 + $0x30] sm:$0xff]
        %v2489 = vld [vmem:[%s3 + $0x38] sm:$0xff]
        %v2490 = vld [vmem:[%s3 + $0x40] sm:$0xff]
        %v2491 = vld [vmem:[%s3 + $0x48] sm:$0xff]
        %v2492 = vld [vmem:[%s3 + $0x50] sm:$0xff]
        %v2493 = vld [vmem:[%s3 + $0x58] sm:$0xff]
        %v2494 = vld [vmem:[%s3 + $0x60] sm:$0xff]
        %v2495 = vld [vmem:[%s3 + $0x68] sm:$0xff]
        %v2496 = vld [vmem:[%s3 + $0x70] sm:$0xff]
        %v2497 = vld [vmem:[%s3 + $0x78] sm:$0xff]
        %v2498 = vld [vmem:[%s3 + $0x80] sm:$0xff]
        %v2499 = vld [vmem:[%s3 + $0x88] sm:$0xff]
        %v2500 = vld [vmem:[%s3 + $0x90] sm:$0xff]
        %v2501 = vld [vmem:[%s3 + $0x98] sm:$0xff]
        %v2502 = vld [vmem:[%s3 + $0xa0] sm:$0xff]
        %v2503 = vld [vmem:[%s3 + $0xa8] sm:$0xff]
        %v2504 = vld [vmem:[%s3 + $0xb0] sm:$0xff]
        %v2505 = vld [vmem:[%s3 + $0xb8] sm:$0xff]
        %v2506 = vld [vmem:[%s3 + $0xc0] sm:$0xff]
        %v2507 = vld [vmem:[%s3 + $0xc8] sm:$0xff]
        %v2508 = vld [vmem:[%s3 + $0xd0] sm:$0xff]
        %v2509 = vld [vmem:[%s3 + $0xd8] sm:$0xff]
        %v2510 = vld [vmem:[%s3 + $0xe0] sm:$0xff]
        %v2511 = vld [vmem:[%s3 + $0xe8] sm:$0xff]
        %v2512 = vld [vmem:[%s3 + $0xf0] sm:$0xff]
        %v2513 = vld [vmem:[%s3 + $0xf8] sm:$0xff]
        %v2514 = vld [vmem:[%s3 + $0x100] sm:$0xff]
        %v2515 = vld [vmem:[%s3 + $0x108] sm:$0xff]
        %v2516 = vld [vmem:[%s3 + $0x110] sm:$0xff]
        %v2517 = vld [vmem:[%s3 + $0x118] sm:$0xff]
        %v2518 = vld [vmem:[%s3 + $0x120] sm:$0xff]
        %v2519 = vld [vmem:[%s3 + $0x128] sm:$0xff]
        %v2520 = vld [vmem:[%s3 + $0x130] sm:$0xff]
        %v2521 = vld [vmem:[%s3 + $0x138] sm:$0xff]
        %v2522 = vld [vmem:[%s3 + $0x140] sm:$0xff]
        %v2523 = vld [vmem:[%s3 + $0x148] sm:$0xff]
        %v2524 = vld [vmem:[%s3 + $0x150] sm:$0xff]
        %v2525 = vld [vmem:[%s3 + $0x158] sm:$0xff]
        %v2526 = vld [vmem:[%s3 + $0x160] sm:$0xff]
        %v2527 = vld [vmem:[%s3 + $0x168] sm:$0xff]
        %v2528 = vld [vmem:[%s3 + $0x170] sm:$0xff]
        %v2529 = vld [vmem:[%s3 + $0x178] sm:$0xff]
        %v2530 = vld [vmem:[%s4] sm:$0x3]
        %v2532 = vperm.slane %v2530, 0
        %v2533 = vperm.slane %v2530, 1
        %v2584 = vunpack.c.l.b16 %v2482
        %v2585 = vunpack.c.h.b16 %v2482
        %v2586 = vunpack.c.l.b16 %v2483
        %v2587 = vunpack.c.h.b16 %v2483
        %v2588 = vunpack.c.l.b16 %v2484
        %v2589 = vunpack.c.h.b16 %v2484
        %v2590 = vunpack.c.l.b16 %v2485
        %v2591 = vunpack.c.h.b16 %v2485
        %v2592 = vunpack.c.l.b16 %v2486
        %v2593 = vunpack.c.h.b16 %v2486
        %v2594 = vunpack.c.l.b16 %v2487
        %v2595 = vunpack.c.h.b16 %v2487
        %v2596 = vunpack.c.l.b16 %v2488
        %v2597 = vunpack.c.h.b16 %v2488
        %v2598 = vunpack.c.l.b16 %v2489
        %v2599 = vunpack.c.h.b16 %v2489
        %v2600 = vunpack.c.l.b16 %v2490
        %v2601 = vunpack.c.h.b16 %v2490
        %v2602 = vunpack.c.l.b16 %v2491
        %v2603 = vunpack.c.h.b16 %v2491
        %v2604 = vunpack.c.l.b16 %v2492
        %v2605 = vunpack.c.h.b16 %v2492
        %v2606 = vunpack.c.l.b16 %v2493
        %v2607 = vunpack.c.h.b16 %v2493
        %v2608 = vunpack.c.l.b16 %v2494
        %v2609 = vunpack.c.h.b16 %v2494
        %v2610 = vunpack.c.l.b16 %v2495
        %v2611 = vunpack.c.h.b16 %v2495
        %v2612 = vunpack.c.l.b16 %v2496
        %v2613 = vunpack.c.h.b16 %v2496
        %v2614 = vunpack.c.l.b16 %v2497
        %v2615 = vunpack.c.h.b16 %v2497
        %v2616 = vunpack.c.l.b16 %v2498
        %v2617 = vunpack.c.h.b16 %v2498
        %v2618 = vunpack.c.l.b16 %v2499
        %v2619 = vunpack.c.h.b16 %v2499
        %v2620 = vunpack.c.l.b16 %v2500
        %v2621 = vunpack.c.h.b16 %v2500
        %v2622 = vunpack.c.l.b16 %v2501
        %v2623 = vunpack.c.h.b16 %v2501
        %v2624 = vunpack.c.l.b16 %v2502
        %v2625 = vunpack.c.h.b16 %v2502
        %v2626 = vunpack.c.l.b16 %v2503
        %v2627 = vunpack.c.h.b16 %v2503
        %v2628 = vunpack.c.l.b16 %v2504
        %v2629 = vunpack.c.h.b16 %v2504
        %v2630 = vunpack.c.l.b16 %v2505
        %v2631 = vunpack.c.h.b16 %v2505
        %v2632 = vunpack.c.l.b16 %v2506
        %v2633 = vunpack.c.h.b16 %v2506
        %v2634 = vunpack.c.l.b16 %v2507
        %v2635 = vunpack.c.h.b16 %v2507
        %v2636 = vunpack.c.l.b16 %v2508
        %v2637 = vunpack.c.h.b16 %v2508
        %v2638 = vunpack.c.l.b16 %v2509
        %v2639 = vunpack.c.h.b16 %v2509
        %v2640 = vunpack.c.l.b16 %v2510
        %v2641 = vunpack.c.h.b16 %v2510
        %v2642 = vunpack.c.l.b16 %v2511
        %v2643 = vunpack.c.h.b16 %v2511
        %v2644 = vunpack.c.l.b16 %v2512
        %v2645 = vunpack.c.h.b16 %v2512
        %v2646 = vunpack.c.l.b16 %v2513
        %v2647 = vunpack.c.h.b16 %v2513
        %v2648 = vunpack.c.l.b16 %v2514
        %v2649 = vunpack.c.h.b16 %v2514
        %v2650 = vunpack.c.l.b16 %v2515
        %v2651 = vunpack.c.h.b16 %v2515
        %v2652 = vunpack.c.l.b16 %v2516
        %v2653 = vunpack.c.h.b16 %v2516
        %v2654 = vunpack.c.l.b16 %v2517
        %v2655 = vunpack.c.h.b16 %v2517
        %v2656 = vunpack.c.l.b16 %v2518
        %v2657 = vunpack.c.h.b16 %v2518
        %v2658 = vunpack.c.l.b16 %v2519
        %v2659 = vunpack.c.h.b16 %v2519
        %v2660 = vunpack.c.l.b16 %v2520
        %v2661 = vunpack.c.h.b16 %v2520
        %v2662 = vunpack.c.l.b16 %v2521
        %v2663 = vunpack.c.h.b16 %v2521
        %v2664 = vunpack.c.l.b16 %v2522
        %v2665 = vunpack.c.h.b16 %v2522
        %v2666 = vunpack.c.l.b16 %v2523
        %v2667 = vunpack.c.h.b16 %v2523
        %v2668 = vunpack.c.l.b16 %v2524
        %v2669 = vunpack.c.h.b16 %v2524
        %v2670 = vunpack.c.l.b16 %v2525
        %v2671 = vunpack.c.h.b16 %v2525
        %v2672 = vunpack.c.l.b16 %v2526
        %v2673 = vunpack.c.h.b16 %v2526
        %v2674 = vunpack.c.l.b16 %v2527
        %v2675 = vunpack.c.h.b16 %v2527
        %v2676 = vunpack.c.l.b16 %v2528
        %v2677 = vunpack.c.h.b16 %v2528
        %v2678 = vunpack.c.l.b16 %v2529
        %v2679 = vunpack.c.h.b16 %v2529
        %v2680 = vpack.c.b16 %v2586, %v2584
        %v2681 = vpack.c.b16 %v2587, %v2585
        %v2682 = vpack.c.b16 %v2590, %v2588
        %v2683 = vpack.c.b16 %v2591, %v2589
        %v2684 = vpack.c.b16 %v2594, %v2592
        %v2685 = vpack.c.b16 %v2595, %v2593
        %v2686 = vpack.c.b16 %v2598, %v2596
        %v2687 = vpack.c.b16 %v2599, %v2597
        %v2688 = vpack.c.b16 %v2602, %v2600
        %v2689 = vpack.c.b16 %v2603, %v2601
        %v2690 = vpack.c.b16 %v2606, %v2604
        %v2691 = vpack.c.b16 %v2607, %v2605
        %v2692 = vpack.c.b16 %v2610, %v2608
        %v2693 = vpack.c.b16 %v2611, %v2609
        %v2694 = vpack.c.b16 %v2614, %v2612
        %v2695 = vpack.c.b16 %v2615, %v2613
        %v2696 = vpack.c.b16 %v2618, %v2616
        %v2697 = vpack.c.b16 %v2619, %v2617
        %v2698 = vpack.c.b16 %v2622, %v2620
        %v2699 = vpack.c.b16 %v2623, %v2621
        %v2700 = vpack.c.b16 %v2626, %v2624
        %v2701 = vpack.c.b16 %v2627, %v2625
        %v2702 = vpack.c.b16 %v2630, %v2628
        %v2703 = vpack.c.b16 %v2631, %v2629
        %v2704 = vpack.c.b16 %v2634, %v2632
        %v2705 = vpack.c.b16 %v2635, %v2633
        %v2706 = vpack.c.b16 %v2638, %v2636
        %v2707 = vpack.c.b16 %v2639, %v2637
        %v2708 = vpack.c.b16 %v2642, %v2640
        %v2709 = vpack.c.b16 %v2643, %v2641
        %v2710 = vpack.c.b16 %v2646, %v2644
        %v2711 = vpack.c.b16 %v2647, %v2645
        %v2712 = vpack.c.b16 %v2650, %v2648
        %v2713 = vpack.c.b16 %v2651, %v2649
        %v2714 = vpack.c.b16 %v2654, %v2652
        %v2715 = vpack.c.b16 %v2655, %v2653
        %v2716 = vpack.c.b16 %v2658, %v2656
        %v2717 = vpack.c.b16 %v2659, %v2657
        %v2718 = vpack.c.b16 %v2662, %v2660
        %v2719 = vpack.c.b16 %v2663, %v2661
        %v2720 = vpack.c.b16 %v2666, %v2664
        %v2721 = vpack.c.b16 %v2667, %v2665
        %v2722 = vpack.c.b16 %v2670, %v2668
        %v2723 = vpack.c.b16 %v2671, %v2669
        %v2724 = vpack.c.b16 %v2674, %v2672
        %v2725 = vpack.c.b16 %v2675, %v2673
        %v2726 = vpack.c.b16 %v2678, %v2676
        %v2727 = vpack.c.b16 %v2679, %v2677
        %2776 = vmatpush.bf16.msra.mxu0 %v2694
        %2777 = vmatpush.bf16.msra.mxu0 %v2692
        %2778 = vmatpush.bf16.msra.mxu0 %v2690
        %2779 = vmatpush.bf16.msra.mxu0 %v2688
        %2780 = vmatpush.bf16.msra.mxu0 %v2686
        %2781 = vmatpush.bf16.msra.mxu0 %v2684
        %2782 = vmatpush.bf16.msra.mxu0 %v2682
        %2783 = vmatpush.bf16.msra.mxu0 %v2680
        %2784 = vmatmul.bf16.gmra.mxu0 %v2458
        %v2785 = vpop.f32.mrf.mxu0
        %v2786 = vadd.f32 %v2532, %v2785
        %v2787 = vpop.f32.mrf.mxu0
        %v2788 = vadd.f32 %v2532, %v2787
        %2789 = vmatmul.bf16.gmra.mxu0 %v2461
        %v2790 = vpop.f32.mrf.mxu0
        %v2791 = vadd.f32 %v2532, %v2790
        %v2792 = vpop.f32.mrf.mxu0
        %v2793 = vadd.f32 %v2532, %v2792
        %2794 = vmatmul.bf16.gmra.mxu0 %v2464
        %v2795 = vpop.f32.mrf.mxu0
        %v2796 = vadd.f32 %v2532, %v2795
        %v2797 = vpop.f32.mrf.mxu0
        %v2798 = vadd.f32 %v2532, %v2797
        %2799 = vmatmul.bf16.gmra.mxu0 %v2467
        %v2800 = vpop.f32.mrf.mxu0
        %v2801 = vadd.f32 %v2532, %v2800
        %v2802 = vpop.f32.mrf.mxu0
        %v2803 = vadd.f32 %v2532, %v2802
        %2804 = vmatmul.bf16.gmra.mxu0 %v2470
        %v2805 = vpop.f32.mrf.mxu0
        %v2806 = vadd.f32 %v2532, %v2805
        %v2807 = vpop.f32.mrf.mxu0
        %v2808 = vadd.f32 %v2532, %v2807
        %2809 = vmatmul.bf16.gmra.mxu0 %v2473
        %v2810 = vpop.f32.mrf.mxu0
        %v2811 = vadd.f32 %v2532, %v2810
        %v2812 = vpop.f32.mrf.mxu0
        %v2813 = vadd.f32 %v2532, %v2812
        %2814 = vmatmul.bf16.gmra.mxu0 %v2476
        %v2815 = vpop.f32.mrf.mxu0
        %v2816 = vadd.f32 %v2532, %v2815
        %v2817 = vpop.f32.mrf.mxu0
        %v2818 = vadd.f32 %v2532, %v2817
        %2819 = vmatmul.bf16.gmra.mxu0 %v2479
        %v2820 = vpop.f32.mrf.mxu0
        %v2821 = vadd.f32 %v2532, %v2820
        %v2822 = vpop.f32.mrf.mxu0
        %v2823 = vadd.f32 %v2532, %v2822
        %2824 = vdwg.mxu0
        %2825 = vmatpush.bf16.msra.mxu0 %v2710
        %2826 = vmatpush.bf16.msra.mxu0 %v2708
        %2827 = vmatpush.bf16.msra.mxu0 %v2706
        %2828 = vmatpush.bf16.msra.mxu0 %v2704
        %2829 = vmatpush.bf16.msra.mxu0 %v2702
        %2830 = vmatpush.bf16.msra.mxu0 %v2700
        %2831 = vmatpush.bf16.msra.mxu0 %v2698
        %2832 = vmatpush.bf16.msra.mxu0 %v2696
        %2833 = vmatmul.bf16.gmra.mxu0 %v2459
        %v2834 = vpop.f32.mrf.mxu0
        %v2835 = vadd.f32 %v2786, %v2834
        %v2836 = vpop.f32.mrf.mxu0
        %v2837 = vadd.f32 %v2788, %v2836
        %2838 = vmatmul.bf16.gmra.mxu0 %v2462
        %v2839 = vpop.f32.mrf.mxu0
        %v2840 = vadd.f32 %v2791, %v2839
        %v2841 = vpop.f32.mrf.mxu0
        %v2842 = vadd.f32 %v2793, %v2841
        %2843 = vmatmul.bf16.gmra.mxu0 %v2465
        %v2844 = vpop.f32.mrf.mxu0
        %v2845 = vadd.f32 %v2796, %v2844
        %v2846 = vpop.f32.mrf.mxu0
        %v2847 = vadd.f32 %v2798, %v2846
        %2848 = vmatmul.bf16.gmra.mxu0 %v2468
        %v2849 = vpop.f32.mrf.mxu0
        %v2850 = vadd.f32 %v2801, %v2849
        %v2851 = vpop.f32.mrf.mxu0
        %v2852 = vadd.f32 %v2803, %v2851
        %2853 = vmatmul.bf16.gmra.mxu0 %v2471
        %v2854 = vpop.f32.mrf.mxu0
        %v2855 = vadd.f32 %v2806, %v2854
        %v2856 = vpop.f32.mrf.mxu0
        %v2857 = vadd.f32 %v2808, %v2856
        %2858 = vmatmul.bf16.gmra.mxu0 %v2474
        %v2859 = vpop.f32.mrf.mxu0
        %v2860 = vadd.f32 %v2811, %v2859
        %v2861 = vpop.f32.mrf.mxu0
        %v2862 = vadd.f32 %v2813, %v2861
        %2863 = vmatmul.bf16.gmra.mxu0 %v2477
        %v2864 = vpop.f32.mrf.mxu0
        %v2865 = vadd.f32 %v2816, %v2864
        %v2866 = vpop.f32.mrf.mxu0
        %v2867 = vadd.f32 %v2818, %v2866
        %2868 = vmatmul.bf16.gmra.mxu0 %v2480
        %v2869 = vpop.f32.mrf.mxu0
        %v2870 = vadd.f32 %v2821, %v2869
        %v2871 = vpop.f32.mrf.mxu0
        %v2872 = vadd.f32 %v2823, %v2871
        %2873 = vdwg.mxu0
        %2874 = vmatpush.bf16.msra.mxu0 %v2726
        %2875 = vmatpush.bf16.msra.mxu0 %v2724
        %2876 = vmatpush.bf16.msra.mxu0 %v2722
        %2877 = vmatpush.bf16.msra.mxu0 %v2720
        %2878 = vmatpush.bf16.msra.mxu0 %v2718
        %2879 = vmatpush.bf16.msra.mxu0 %v2716
        %2880 = vmatpush.bf16.msra.mxu0 %v2714
        %2881 = vmatpush.bf16.msra.mxu0 %v2712
        %2882 = vmatmul.bf16.gmra.mxu0 %v2460
        %v2883 = vpop.f32.mrf.mxu0
        %v2884 = vadd.f32 %v2835, %v2883
        %v2885 = vpop.f32.mrf.mxu0
        %v2886 = vadd.f32 %v2837, %v2885
        %2887 = vmatmul.bf16.gmra.mxu0 %v2463
        %v2888 = vpop.f32.mrf.mxu0
        %v2889 = vadd.f32 %v2840, %v2888
        %v2890 = vpop.f32.mrf.mxu0
        %v2891 = vadd.f32 %v2842, %v2890
        %2892 = vmatmul.bf16.gmra.mxu0 %v2466
        %v2893 = vpop.f32.mrf.mxu0
        %v2894 = vadd.f32 %v2845, %v2893
        %v2895 = vpop.f32.mrf.mxu0
        %v2896 = vadd.f32 %v2847, %v2895
        %2897 = vmatmul.bf16.gmra.mxu0 %v2469
        %v2898 = vpop.f32.mrf.mxu0
        %v2899 = vadd.f32 %v2850, %v2898
        %v2900 = vpop.f32.mrf.mxu0
        %v2901 = vadd.f32 %v2852, %v2900
        %2902 = vmatmul.bf16.gmra.mxu0 %v2472
        %v2903 = vpop.f32.mrf.mxu0
        %v2904 = vadd.f32 %v2855, %v2903
        %v2905 = vpop.f32.mrf.mxu0
        %v2906 = vadd.f32 %v2857, %v2905
        %2907 = vmatmul.bf16.gmra.mxu0 %v2475
        %v2908 = vpop.f32.mrf.mxu0
        %v2909 = vadd.f32 %v2860, %v2908
        %v2910 = vpop.f32.mrf.mxu0
        %v2911 = vadd.f32 %v2862, %v2910
        %2912 = vmatmul.bf16.gmra.mxu0 %v2478
        %v2913 = vpop.f32.mrf.mxu0
        %v2914 = vadd.f32 %v2865, %v2913
        %v2915 = vpop.f32.mrf.mxu0
        %v2916 = vadd.f32 %v2867, %v2915
        %2917 = vmatmul.bf16.gmra.mxu0 %v2481
        %v2918 = vpop.f32.mrf.mxu0
        %v2919 = vadd.f32 %v2870, %v2918
        %v2920 = vpop.f32.mrf.mxu0
        %v2921 = vadd.f32 %v2872, %v2920
        %2922 = vdwg.mxu0
        %2923 = vmatpush.bf16.msra.mxu0 %v2695
        %2924 = vmatpush.bf16.msra.mxu0 %v2693
        %2925 = vmatpush.bf16.msra.mxu0 %v2691
        %2926 = vmatpush.bf16.msra.mxu0 %v2689
        %2927 = vmatpush.bf16.msra.mxu0 %v2687
        %2928 = vmatpush.bf16.msra.mxu0 %v2685
        %2929 = vmatpush.bf16.msra.mxu0 %v2683
        %2930 = vmatpush.bf16.msra.mxu0 %v2681
        %2931 = vmatmul.bf16.gmra.mxu0 %v2458
        %v2932 = vpop.f32.mrf.mxu0
        %v2933 = vadd.f32 %v2533, %v2932
        %v2934 = vpop.f32.mrf.mxu0
        %v2935 = vadd.f32 %v2533, %v2934
        %2936 = vmatmul.bf16.gmra.mxu0 %v2461
        %v2937 = vpop.f32.mrf.mxu0
        %v2938 = vadd.f32 %v2533, %v2937
        %v2939 = vpop.f32.mrf.mxu0
        %v2940 = vadd.f32 %v2533, %v2939
        %2941 = vmatmul.bf16.gmra.mxu0 %v2464
        %v2942 = vpop.f32.mrf.mxu0
        %v2943 = vadd.f32 %v2533, %v2942
        %v2944 = vpop.f32.mrf.mxu0
        %v2945 = vadd.f32 %v2533, %v2944
        %2946 = vmatmul.bf16.gmra.mxu0 %v2467
        %v2947 = vpop.f32.mrf.mxu0
        %v2948 = vadd.f32 %v2533, %v2947
        %v2949 = vpop.f32.mrf.mxu0
        %v2950 = vadd.f32 %v2533, %v2949
        %2951 = vmatmul.bf16.gmra.mxu0 %v2470
        %v2952 = vpop.f32.mrf.mxu0
        %v2953 = vadd.f32 %v2533, %v2952
        %v2954 = vpop.f32.mrf.mxu0
        %v2955 = vadd.f32 %v2533, %v2954
        %2956 = vmatmul.bf16.gmra.mxu0 %v2473
        %v2957 = vpop.f32.mrf.mxu0
        %v2958 = vadd.f32 %v2533, %v2957
        %v2959 = vpop.f32.mrf.mxu0
        %v2960 = vadd.f32 %v2533, %v2959
        %2961 = vmatmul.bf16.gmra.mxu0 %v2476
        %v2962 = vpop.f32.mrf.mxu0
        %v2963 = vadd.f32 %v2533, %v2962
        %v2964 = vpop.f32.mrf.mxu0
        %v2965 = vadd.f32 %v2533, %v2964
        %2966 = vmatmul.bf16.gmra.mxu0 %v2479
        %v2967 = vpop.f32.mrf.mxu0
        %v2968 = vadd.f32 %v2533, %v2967
        %v2969 = vpop.f32.mrf.mxu0
        %v2970 = vadd.f32 %v2533, %v2969
        %2971 = vdwg.mxu0
        %2972 = vmatpush.bf16.msra.mxu0 %v2711
        %2973 = vmatpush.bf16.msra.mxu0 %v2709
        %2974 = vmatpush.bf16.msra.mxu0 %v2707
        %2975 = vmatpush.bf16.msra.mxu0 %v2705
        %2976 = vmatpush.bf16.msra.mxu0 %v2703
        %2977 = vmatpush.bf16.msra.mxu0 %v2701
        %2978 = vmatpush.bf16.msra.mxu0 %v2699
        %2979 = vmatpush.bf16.msra.mxu0 %v2697
        %2980 = vmatmul.bf16.gmra.mxu0 %v2459
        %v2981 = vpop.f32.mrf.mxu0
        %v2982 = vadd.f32 %v2933, %v2981
        %v2983 = vpop.f32.mrf.mxu0
        %v2984 = vadd.f32 %v2935, %v2983
        %2985 = vmatmul.bf16.gmra.mxu0 %v2462
        %v2986 = vpop.f32.mrf.mxu0
        %v2987 = vadd.f32 %v2938, %v2986
        %v2988 = vpop.f32.mrf.mxu0
        %v2989 = vadd.f32 %v2940, %v2988
        %2990 = vmatmul.bf16.gmra.mxu0 %v2465
        %v2991 = vpop.f32.mrf.mxu0
        %v2992 = vadd.f32 %v2943, %v2991
        %v2993 = vpop.f32.mrf.mxu0
        %v2994 = vadd.f32 %v2945, %v2993
        %2995 = vmatmul.bf16.gmra.mxu0 %v2468
        %v2996 = vpop.f32.mrf.mxu0
        %v2997 = vadd.f32 %v2948, %v2996
        %v2998 = vpop.f32.mrf.mxu0
        %v2999 = vadd.f32 %v2950, %v2998
        %3000 = vmatmul.bf16.gmra.mxu0 %v2471
        %v3001 = vpop.f32.mrf.mxu0
        %v3002 = vadd.f32 %v2953, %v3001
        %v3003 = vpop.f32.mrf.mxu0
        %v3004 = vadd.f32 %v2955, %v3003
        %3005 = vmatmul.bf16.gmra.mxu0 %v2474
        %v3006 = vpop.f32.mrf.mxu0
        %v3007 = vadd.f32 %v2958, %v3006
        %v3008 = vpop.f32.mrf.mxu0
        %v3009 = vadd.f32 %v2960, %v3008
        %3010 = vmatmul.bf16.gmra.mxu0 %v2477
        %v3011 = vpop.f32.mrf.mxu0
        %v3012 = vadd.f32 %v2963, %v3011
        %v3013 = vpop.f32.mrf.mxu0
        %v3014 = vadd.f32 %v2965, %v3013
        %3015 = vmatmul.bf16.gmra.mxu0 %v2480
        %v3016 = vpop.f32.mrf.mxu0
        %v3017 = vadd.f32 %v2968, %v3016
        %v3018 = vpop.f32.mrf.mxu0
        %v3019 = vadd.f32 %v2970, %v3018
        %3020 = vdwg.mxu0
        %3021 = vmatpush.bf16.msra.mxu0 %v2727
        %3022 = vmatpush.bf16.msra.mxu0 %v2725
        %3023 = vmatpush.bf16.msra.mxu0 %v2723
        %3024 = vmatpush.bf16.msra.mxu0 %v2721
        %3025 = vmatpush.bf16.msra.mxu0 %v2719
        %3026 = vmatpush.bf16.msra.mxu0 %v2717
        %3027 = vmatpush.bf16.msra.mxu0 %v2715
        %3028 = vmatpush.bf16.msra.mxu0 %v2713
        %3029 = vmatmul.bf16.gmra.mxu0 %v2460
        %v3030 = vpop.f32.mrf.mxu0
        %v3031 = vadd.f32 %v2982, %v3030
        %v3032 = vpop.f32.mrf.mxu0
        %v3033 = vadd.f32 %v2984, %v3032
        %3034 = vmatmul.bf16.gmra.mxu0 %v2463
        %v3035 = vpop.f32.mrf.mxu0
        %v3036 = vadd.f32 %v2987, %v3035
        %v3037 = vpop.f32.mrf.mxu0
        %v3038 = vadd.f32 %v2989, %v3037
        %3039 = vmatmul.bf16.gmra.mxu0 %v2466
        %v3040 = vpop.f32.mrf.mxu0
        %v3041 = vadd.f32 %v2992, %v3040
        %v3042 = vpop.f32.mrf.mxu0
        %v3043 = vadd.f32 %v2994, %v3042
        %3044 = vmatmul.bf16.gmra.mxu0 %v2469
        %v3045 = vpop.f32.mrf.mxu0
        %v3046 = vadd.f32 %v2997, %v3045
        %v3047 = vpop.f32.mrf.mxu0
        %v3048 = vadd.f32 %v2999, %v3047
        %3049 = vmatmul.bf16.gmra.mxu0 %v2472
        %v3050 = vpop.f32.mrf.mxu0
        %v3051 = vadd.f32 %v3002, %v3050
        %v3052 = vpop.f32.mrf.mxu0
        %v3053 = vadd.f32 %v3004, %v3052
        %3054 = vmatmul.bf16.gmra.mxu0 %v2475
        %v3055 = vpop.f32.mrf.mxu0
        %v3056 = vadd.f32 %v3007, %v3055
        %v3057 = vpop.f32.mrf.mxu0
        %v3058 = vadd.f32 %v3009, %v3057
        %3059 = vmatmul.bf16.gmra.mxu0 %v2478
        %v3060 = vpop.f32.mrf.mxu0
        %v3061 = vadd.f32 %v3012, %v3060
        %v3062 = vpop.f32.mrf.mxu0
        %v3063 = vadd.f32 %v3014, %v3062
        %3064 = vmatmul.bf16.gmra.mxu0 %v2481
        %v3065 = vpop.f32.mrf.mxu0
        %v3066 = vadd.f32 %v3017, %v3065
        %v3067 = vpop.f32.mrf.mxu0
        %v3068 = vadd.f32 %v3019, %v3067
        %3069 = vdwg.mxu0
        %v3070 = vpack.c.bf16 %v2886, %v2884
        %v3071 = vpack.c.bf16 %v3033, %v3031
        %v3072 = vpack.c.bf16 %v2891, %v2889
        %v3073 = vpack.c.bf16 %v3038, %v3036
        %v3074 = vpack.c.bf16 %v2896, %v2894
        %v3075 = vpack.c.bf16 %v3043, %v3041
        %v3076 = vpack.c.bf16 %v2901, %v2899
        %v3077 = vpack.c.bf16 %v3048, %v3046
        %v3078 = vpack.c.bf16 %v2906, %v2904
        %v3079 = vpack.c.bf16 %v3053, %v3051
        %v3080 = vpack.c.bf16 %v2911, %v2909
        %v3081 = vpack.c.bf16 %v3058, %v3056
        %v3082 = vpack.c.bf16 %v2916, %v2914
        %v3083 = vpack.c.bf16 %v3063, %v3061
        %v3084 = vpack.c.bf16 %v2921, %v2919
        %v3085 = vpack.c.bf16 %v3068, %v3066
        %v3086 = vld [vmem:[%s5] sm:$0xf]
        %v3087 = vld [vmem:[%s5 + $0x4] sm:$0xf]
        %v3088 = vld [vmem:[%s5 + $0x8] sm:$0xf]
        %v3089 = vld [vmem:[%s5 + $0xc] sm:$0xf]
        %v3090 = vld [vmem:[%s5 + $0x10] sm:$0xf]
        %v3091 = vld [vmem:[%s5 + $0x14] sm:$0xf]
        %v3092 = vld [vmem:[%s5 + $0x18] sm:$0xf]
        %v3093 = vld [vmem:[%s5 + $0x1c] sm:$0xf]
        %v3094 = vld [vmem:[%s5 + $0x20] sm:$0xf]
        %v3095 = vld [vmem:[%s5 + $0x24] sm:$0xf]
        %v3096 = vld [vmem:[%s5 + $0x28] sm:$0xf]
        %v3097 = vld [vmem:[%s5 + $0x2c] sm:$0xf]
        %v3098 = vld [vmem:[%s5 + $0x30] sm:$0xf]
        %v3099 = vld [vmem:[%s5 + $0x34] sm:$0xf]
        %v3100 = vld [vmem:[%s5 + $0x38] sm:$0xf]
        %v3101 = vld [vmem:[%s5 + $0x3c] sm:$0xf]
        %v3102 = vld [vmem:[%s5 + $0x40] sm:$0xf]
        %v3103 = vld [vmem:[%s5 + $0x44] sm:$0xf]
        %v3104 = vld [vmem:[%s5 + $0x48] sm:$0xf]
        %v3105 = vld [vmem:[%s5 + $0x4c] sm:$0xf]
        %v3106 = vld [vmem:[%s5 + $0x50] sm:$0xf]
        %v3107 = vld [vmem:[%s5 + $0x54] sm:$0xf]
        %v3108 = vld [vmem:[%s5 + $0x58] sm:$0xf]
        %v3109 = vld [vmem:[%s5 + $0x5c] sm:$0xf]
        %v3110 = vld [vmem:[%s6] sm:$0x1]
        %v3112 = vperm.slane %v3110, 0
        %v3138 = vunpack.c.l.b16 %v3086
        %v3139 = vunpack.c.l.b16 %v3087
        %v3140 = vunpack.c.l.b16 %v3088
        %v3141 = vunpack.c.l.b16 %v3089
        %v3142 = vunpack.c.l.b16 %v3090
        %v3143 = vunpack.c.l.b16 %v3091
        %v3144 = vunpack.c.l.b16 %v3092
        %v3145 = vunpack.c.l.b16 %v3093
        %v3146 = vunpack.c.l.b16 %v3094
        %v3147 = vunpack.c.l.b16 %v3095
        %v3148 = vunpack.c.l.b16 %v3096
        %v3149 = vunpack.c.l.b16 %v3097
        %v3150 = vunpack.c.l.b16 %v3098
        %v3151 = vunpack.c.l.b16 %v3099
        %v3152 = vunpack.c.l.b16 %v3100
        %v3153 = vunpack.c.l.b16 %v3101
        %v3154 = vunpack.c.l.b16 %v3102
        %v3155 = vunpack.c.l.b16 %v3103
        %v3156 = vunpack.c.l.b16 %v3104
        %v3157 = vunpack.c.l.b16 %v3105
        %v3158 = vunpack.c.l.b16 %v3106
        %v3159 = vunpack.c.l.b16 %v3107
        %v3160 = vunpack.c.l.b16 %v3108
        %v3161 = vunpack.c.l.b16 %v3109
        %v3162 = vpack.c.b16 %v3139, %v3138
        %v3163 = vpack.c.b16 %v3141, %v3140
        %v3164 = vpack.c.b16 %v3143, %v3142
        %v3165 = vpack.c.b16 %v3145, %v3144
        %v3166 = vpack.c.b16 %v3147, %v3146
        %v3167 = vpack.c.b16 %v3149, %v3148
        %v3168 = vpack.c.b16 %v3151, %v3150
        %v3169 = vpack.c.b16 %v3153, %v3152
        %v3170 = vpack.c.b16 %v3155, %v3154
        %v3171 = vpack.c.b16 %v3157, %v3156
        %v3172 = vpack.c.b16 %v3159, %v3158
        %v3173 = vpack.c.b16 %v3161, %v3160
        %vm3186 = vcmask 523264
        %v3188 = vsel %vm3186, %v3071, 0
        %v3191 = vsel %vm3186, %v3073, 0
        %v3194 = vsel %vm3186, %v3075, 0
        %v3197 = vsel %vm3186, %v3077, 0
        %v3200 = vsel %vm3186, %v3079, 0
        %v3203 = vsel %vm3186, %v3081, 0
        %v3206 = vsel %vm3186, %v3083, 0
        %v3209 = vsel %vm3186, %v3085, 0
        %3211 = vmatpush.bf16.msra.mxu0 %v3169
        %3212 = vmatpush.bf16.msra.mxu0 %v3168
        %3213 = vmatpush.bf16.msra.mxu0 %v3167
        %3214 = vmatpush.bf16.msra.mxu0 %v3166
        %3215 = vmatpush.bf16.msra.mxu0 %v3165
        %3216 = vmatpush.bf16.msra.mxu0 %v3164
        %3217 = vmatpush.bf16.msra.mxu0 %v3163
        %3218 = vmatpush.bf16.msra.mxu0 %v3162
        %3219 = vmatmul.bf16.gmra.mxu0 %v3070
        %v3220 = vpop.f32.mrf.mxu0
        %v3221 = vadd.f32 %v3112, %v3220
        %v3222 = vpop.f32.mrf.mxu0
        %v3223 = vadd.f32 %v3112, %v3222
        %3224 = vmatmul.bf16.gmra.mxu0 %v3072
        %v3225 = vpop.f32.mrf.mxu0
        %v3226 = vadd.f32 %v3112, %v3225
        %v3227 = vpop.f32.mrf.mxu0
        %v3228 = vadd.f32 %v3112, %v3227
        %3229 = vmatmul.bf16.gmra.mxu0 %v3074
        %v3230 = vpop.f32.mrf.mxu0
        %v3231 = vadd.f32 %v3112, %v3230
        %v3232 = vpop.f32.mrf.mxu0
        %v3233 = vadd.f32 %v3112, %v3232
        %3234 = vmatmul.bf16.gmra.mxu0 %v3076
        %v3235 = vpop.f32.mrf.mxu0
        %v3236 = vadd.f32 %v3112, %v3235
        %v3237 = vpop.f32.mrf.mxu0
        %v3238 = vadd.f32 %v3112, %v3237
        %3239 = vmatmul.bf16.gmra.mxu0 %v3078
        %v3240 = vpop.f32.mrf.mxu0
        %v3241 = vadd.f32 %v3112, %v3240
        %v3242 = vpop.f32.mrf.mxu0
        %v3243 = vadd.f32 %v3112, %v3242
        %3244 = vmatmul.bf16.gmra.mxu0 %v3080
        %v3245 = vpop.f32.mrf.mxu0
        %v3246 = vadd.f32 %v3112, %v3245
        %v3247 = vpop.f32.mrf.mxu0
        %v3248 = vadd.f32 %v3112, %v3247
        %3249 = vmatmul.bf16.gmra.mxu0 %v3082
        %v3250 = vpop.f32.mrf.mxu0
        %v3251 = vadd.f32 %v3112, %v3250
        %v3252 = vpop.f32.mrf.mxu0
        %v3253 = vadd.f32 %v3112, %v3252
        %3254 = vmatmul.bf16.gmra.mxu0 %v3084
        %v3255 = vpop.f32.mrf.mxu0
        %v3256 = vadd.f32 %v3112, %v3255
        %v3257 = vpop.f32.mrf.mxu0
        %v3258 = vadd.f32 %v3112, %v3257
        %3259 = vdwg.mxu0
        %3260 = vmatpush.bf16.msra.mxu0 0
        %3261 = vmatpush.bf16.msra.mxu0 0
        %3262 = vmatpush.bf16.msra.mxu0 0
        %3263 = vmatpush.bf16.msra.mxu0 0
        %3264 = vmatpush.bf16.msra.mxu0 %v3173
        %3265 = vmatpush.bf16.msra.mxu0 %v3172
        %3266 = vmatpush.bf16.msra.mxu0 %v3171
        %3267 = vmatpush.bf16.msra.mxu0 %v3170
        %3268 = vmatmul.bf16.gmra.mxu0 %v3188
        %v3269 = vpop.f32.mrf.mxu0
        %v3270 = vadd.f32 %v3221, %v3269
        %v3271 = vpop.f32.mrf.mxu0
        %v3272 = vadd.f32 %v3223, %v3271
        %3273 = vmatmul.bf16.gmra.mxu0 %v3191
        %v3274 = vpop.f32.mrf.mxu0
        %v3275 = vadd.f32 %v3226, %v3274
        %v3276 = vpop.f32.mrf.mxu0
        %v3277 = vadd.f32 %v3228, %v3276
        %3278 = vmatmul.bf16.gmra.mxu0 %v3194
        %v3279 = vpop.f32.mrf.mxu0
        %v3280 = vadd.f32 %v3231, %v3279
        %v3281 = vpop.f32.mrf.mxu0
        %v3282 = vadd.f32 %v3233, %v3281
        %3283 = vmatmul.bf16.gmra.mxu0 %v3197
        %v3284 = vpop.f32.mrf.mxu0
        %v3285 = vadd.f32 %v3236, %v3284
        %v3286 = vpop.f32.mrf.mxu0
        %v3287 = vadd.f32 %v3238, %v3286
        %3288 = vmatmul.bf16.gmra.mxu0 %v3200
        %v3289 = vpop.f32.mrf.mxu0
        %v3290 = vadd.f32 %v3241, %v3289
        %v3291 = vpop.f32.mrf.mxu0
        %v3292 = vadd.f32 %v3243, %v3291
        %3293 = vmatmul.bf16.gmra.mxu0 %v3203
        %v3294 = vpop.f32.mrf.mxu0
        %v3295 = vadd.f32 %v3246, %v3294
        %v3296 = vpop.f32.mrf.mxu0
        %v3297 = vadd.f32 %v3248, %v3296
        %3298 = vmatmul.bf16.gmra.mxu0 %v3206
        %v3299 = vpop.f32.mrf.mxu0
        %v3300 = vadd.f32 %v3251, %v3299
        %v3301 = vpop.f32.mrf.mxu0
        %v3302 = vadd.f32 %v3253, %v3301
        %3303 = vmatmul.bf16.gmra.mxu0 %v3209
        %v3304 = vpop.f32.mrf.mxu0
        %v3305 = vadd.f32 %v3256, %v3304
        %v3306 = vpop.f32.mrf.mxu0
        %v3307 = vadd.f32 %v3258, %v3306
        %3308 = vdwg.mxu0
        %3309 = vst [vmem:[%s316] sm:$0xff] %v3270
        %3310 = vst [vmem:[%s316 + $0x8] sm:$0xff] %v3272
        %3311 = vst [vmem:[%s316 + $0x10] sm:$0xff] %v3275
        %3312 = vst [vmem:[%s316 + $0x18] sm:$0xff] %v3277
        %3313 = vst [vmem:[%s316 + $0x20] sm:$0xff] %v3280
        %3314 = vst [vmem:[%s316 + $0x28] sm:$0xff] %v3282
        %3315 = vst [vmem:[%s316 + $0x30] sm:$0xff] %v3285
        %3316 = vst [vmem:[%s316 + $0x38] sm:$0xff] %v3287
        %3317 = vst [vmem:[%s316 + $0x40] sm:$0xff] %v3290
        %3318 = vst [vmem:[%s316 + $0x48] sm:$0xff] %v3292
        %3319 = vst [vmem:[%s316 + $0x50] sm:$0xff] %v3295
        %3320 = vst [vmem:[%s316 + $0x58] sm:$0xff] %v3297
        %3321 = vst [vmem:[%s316 + $0x60] sm:$0xff] %v3300
        %3322 = vst [vmem:[%s316 + $0x68] sm:$0xff] %v3302
        %3323 = vst [vmem:[%s316 + $0x70] sm:$0xff] %v3305
        %3324 = vst [vmem:[%s316 + $0x78] sm:$0xff] %v3307
        %s3325 = sand.u32 %s185, 1
        %s3326 = scalar_lea.sflag [#allocation4], %s3325
        %s3327 = sand.u32 %s185, 1
        %s3328 = smul.addr %s3327, 128
        %s3329 = scalar_lea.vmem [#allocation7], %s3328
        // Predicated region
        $region57: #{tpu_custom_call.1} parent=47 // pred_check
          %p3330 = pneg %p195
        $region58: #{tpu_custom_call.1} parent=47 // pred_check_branch
          %3332 = sbr.rel (%p3330) target = $region60
        $region59: #{tpu_custom_call.1} parent=47 // pred_region
          %s3333 = smul.u32 16, %s25
          %3335 = vsyncadd %s3326, 0
          %s3336 = smul.addr %s3333, 8
          %s3337 = scalar_lea.hbm %s7, %s3336
          %s3338 = sshll.u32 %s3329, 4
          %s3339 = int_to_ptr.vmem [resolvable:$true] %s3338
          %s3340 = sshll.u32 %s3337, 4
          %s3341 = int_to_ptr.hbm [resolvable:$true] %s3340
          %3346 = dma.vmem_to_hbm [thread:$0]  %s3339, 2048, %s3341, %s3326, 128, 128, 8
        $region60: #{tpu_custom_call.1} parent=47 // pred_fallthru
          _
      $region48: #{tpu_custom_call.1} parent=5 // pred_fallthru
        _
      %p3347 = scmp.le.s32.totalorder 2, %s20
      // Predicated region
      $region61: #{tpu_custom_call.1} parent=5 // pred_check
        %p3348 = pneg %p3347
      $region62: #{tpu_custom_call.1} parent=5 // pred_check_branch
        %3350 = sbr.rel (%p3348) target = $region64
      $region63: #{tpu_custom_call.1} parent=5 // pred_region
        %s3351 = ssub.s32 %s20, 2
        // Predicated region
        $region65: #{tpu_custom_call.1} parent=63 // pred_check
          %p3352 = pneg %p201
        $region66: #{tpu_custom_call.1} parent=63 // pred_check_branch
          %3354 = sbr.rel (%p3352) target = $region68
        $region67: #{tpu_custom_call.1} parent=63 // pred_region
          %s3355 = sand.u32 %s186, 1
          %s3356 = scalar_lea.sflag [#allocation4], %s3355
          %s3357 = sand.u32 %s186, 1
          %s3358 = smul.addr %s3357, 128
          %s3359 = scalar_lea.vmem [#allocation7], %s3358
          %3361 = dma.done %s3356, 2048
        $region68: #{tpu_custom_call.1} parent=63 // pred_fallthru
          _
      $region64: #{tpu_custom_call.1} parent=5 // pred_fallthru
        _
    $region6: #{tpu_custom_call.1} parent=1 // loop_footer
      %s24 = sadd.s32 1, %s20
    $region7: #{tpu_custom_call.1} parent=1 // loop_footer_branch
      %19 = sbr.rel target = $region3
    $region8: #{tpu_custom_call.1} parent=1 // loop_exit
      _
    %3362 = vsyncpa [#allocation3], 1
    %s3363 = scalar_lea.sflag [#allocation3], 1
    %3364 = vsyncpa %s3363, 1
    %3365 = vsyncpa [#allocation6], 1
    %3366 = vsyncpa [#allocation4], 1
    %s3367 = scalar_lea.sflag [#allocation4], 1
    %3368 = vsyncpa %s3367, 1

</llo_original>
